<compile_context>
chip_gen: v7x
topology: tpu7x:2x2x1
jax: 0.10.0
libtpu: 0.0.40
codegen_flags: <defaults>
</compile_context>

<pallas_src>
import functools

import jax
import jax.numpy as jnp
from jax.experimental import pallas as pl
from jax.experimental.pallas import tpu as pltpu

# ---------------- config (small shapes consistent with the module) -----------
HIDDEN = 32        # config['hidden_size']
KERNEL = 3         # config['kernel_size']
NUM_LAYERS = 2     # config['num_layers']
BATCH = 2
SEQ = 8


# =========================== fused TextRCNN kernel ============================
def _text_rcnn_kernel(x_ref, wih_ref, whh_ref, b_ref, wcnn_ref, out_ref, *,
                      seq, batch_pad, hidden, ksize):
    T, B, H, K = seq, batch_pad, hidden, ksize
    x = x_ref[...]                                        # [T*B, H] time-major

    # ---- layer-1 input projection for ALL timesteps: one MXU matmul + bias ----
    gx1 = (jnp.dot(x, wih_ref[0], preferred_element_type=jnp.float32)
           + b_ref[0])                                    # [T*B, 4H]
    b2 = b_ref[1]                                         # [1, 4H]

    # ---- wavefront weight [2H, 8H]: cols 0:4H -> layer-1 gates, 4H:8H -> layer-2 ----
    zero_h4h = jnp.zeros((H, 4 * H), jnp.float32)
    w_wave = jnp.concatenate(
        [jnp.concatenate([whh_ref[0], wih_ref[1]], axis=1),   # [H, 8H]
         jnp.concatenate([zero_h4h, whh_ref[1]], axis=1)],    # [H, 8H]
        axis=0)                                               # [2H, 8H]

    def lstm_cell(gates, c):
        # Full-width activations (one EUP pass each over the 4H=128-lane gates),
        # then split i|f|g|o at lane offsets 0,H,2H,3H.
        sig = jax.nn.sigmoid(gates)
        th = jnp.tanh(gates)
        i_g = sig[:, 0 * H:1 * H]
        f_g = sig[:, 1 * H:2 * H]
        g_g = th[:, 2 * H:3 * H]
        o_g = sig[:, 3 * H:4 * H]
        c_new = f_g * c + i_g * g_g
        h_new = o_g * jnp.tanh(c_new)
        return h_new, c_new

    h1 = jnp.zeros((B, H), jnp.float32)
    c1 = jnp.zeros((B, H), jnp.float32)
    h2 = jnp.zeros((B, H), jnp.float32)
    c2 = jnp.zeros((B, H), jnp.float32)
    h2_out = []

    # Wavefront step 0: layer-1 @ t=0 only; recurrent term is exactly zero, so the
    # matmul is skipped and the chain starts straight from gx1.
    h1, c1 = lstm_cell(gx1[0:B, :], c1)

    # Wavefront steps s=1..T: one block-structured matmul feeds BOTH
    # (layer1, t=s) and (layer2, t=s-1); T+1 dependent steps total.
    for s in range(1, T + 1):                             # static unroll
        hc = jnp.concatenate([h1, h2], axis=1)            # [B, 2H]
        g = jnp.dot(hc, w_wave, preferred_element_type=jnp.float32)  # [B, 8H]

        gates2 = g[:, 4 * H:8 * H] + b2                   # layer-2, t = s-1
        h2, c2 = lstm_cell(gates2, c2)
        h2_out.append(h2)

        if s < T:                                         # layer-1, t = s
            gates1 = g[:, 0:4 * H] + gx1[s * B:(s + 1) * B, :]
            h1, c1 = lstm_cell(gates1, c1)

    cur = jnp.concatenate(h2_out, axis=0)                 # [T*B, H] time-major

    # ---------------------------- GatedCNN (im2col) ---------------------------
    pad = (K - 1) // 2
    zpad = jnp.zeros((pad * B, H), jnp.float32)
    xp = jnp.concatenate([zpad, cur, zpad], axis=0)       # in-kernel 'same' padding
    # im2col slab: one matmul covers all K taps with MXU-internal accumulation.
    slab = jnp.concatenate(
        [xp[k * B:k * B + T * B, :] for k in range(K)], axis=1)   # [T*B, K*H]
    acc = jnp.dot(slab, wcnn_ref[...],
                  preferred_element_type=jnp.float32)     # [T*B, 2H]
    # GatedCNN: cnn2(x) * sigmoid(cnn1(x))
    out_ref[...] = acc[:, H:2 * H] * jax.nn.sigmoid(acc[:, 0:H])


def _fused_call(x_tm, wih, whh, b, wcnn_flat, *, seq, batch_pad, hidden, ksize):
    T, B, H, K = seq, batch_pad, hidden, ksize
    kernel = functools.partial(_text_rcnn_kernel, seq=T, batch_pad=B, hidden=H,
                               ksize=K)
    return pl.pallas_call(
        kernel,
        out_shape=jax.ShapeDtypeStruct((T * B, H), jnp.float32),
        grid=(1,),
        in_specs=[
            pl.BlockSpec((T * B, H), lambda i: (0, 0)),
            pl.BlockSpec((2, H, 4 * H), lambda i: (0, 0, 0)),
            pl.BlockSpec((2, H, 4 * H), lambda i: (0, 0, 0)),
            pl.BlockSpec((2, 1, 4 * H), lambda i: (0, 0, 0)),
            pl.BlockSpec((K * H, 2 * H), lambda i: (0, 0)),
        ],
        out_specs=pl.BlockSpec((T * B, H), lambda i: (0, 0)),
        compiler_params=pltpu.CompilerParams(
            dimension_semantics=("arbitrary",)),
    )(x_tm, wih, whh, b, wcnn_flat)


@jax.jit
def text_rcnn_forward(x, wih, whh, b, wcnn):
    """x: [B, T, H] (batch_first, like the PyTorch module). Returns [B, T, H]."""
    B, T, H = x.shape
    L = wih.shape[0]
    K = wcnn.shape[0]
    assert L == 2, "wavefront kernel is specialized for num_layers=2 (the config)"
    assert K % 2 == 1, "in-kernel 'same' padding matches PyTorch only for odd K"
    assert wih.shape[1] == H, "kernel assumes input_size == hidden_size"

    # Pad batch (sublane dim) to a multiple of 8 so every per-timestep slice /
    # concat inside the kernel is vreg-aligned.  Padded rows are independent of
    # the real rows and sliced off below.
    B_pad = ((B + 7) // 8) * 8
    x_p = jnp.pad(x, ((0, B_pad - B), (0, 0), (0, 0)))
    x_tm = jnp.swapaxes(x_p, 0, 1).reshape(T * B_pad, H)    # time-major
    wcnn_flat = wcnn.reshape(K * H, 2 * H)                   # im2col weight layout

    out_tm = _fused_call(x_tm, wih, whh, b, wcnn_flat, seq=T, batch_pad=B_pad,
                         hidden=H, ksize=K)
    out = jnp.swapaxes(out_tm.reshape(T, B_pad, H), 0, 1)    # [B_pad, T, H]
    return out[:B]


# ============================ pure-JAX reference ==============================
def _ref_forward(x, wih, whh, b, wcnn):
    B, T, H = x.shape
    L = wih.shape[0]
    K = wcnn.shape[0]

    out = x
    for layer in range(L):
        w_ih_t = wih[layer]
        w_hh_t = whh[layer]
        bias = b[layer, 0]

        def step(carry, xt, w_ih_t=w_ih_t, w_hh_t=w_hh_t, bias=bias):
            h, c = carry
            gates = xt @ w_ih_t + h @ w_hh_t + bias
            i = jax.nn.sigmoid(gates[:, 0 * H:1 * H])
            f = jax.nn.sigmoid(gates[:, 1 * H:2 * H])
            g = jnp.tanh(gates[:, 2 * H:3 * H])
            o = jax.nn.sigmoid(gates[:, 3 * H:4 * H])
            c = f * c + i * g
            h = o * jnp.tanh(c)
            return (h, c), h

        init = (jnp.zeros((B, H)), jnp.zeros((B, H)))
        _, hs = jax.lax.scan(step, init, jnp.swapaxes(out, 0, 1))
        out = jnp.swapaxes(hs, 0, 1)

    pad = (K - 1) // 2
    xp = jnp.pad(out, ((0, 0), (pad, pad), (0, 0)))

    def conv(w_sel):
        acc = jnp.zeros_like(out)
        for k in range(K):
            acc = acc + jnp.einsum('bti,io->bto', xp[:, k:k + T, :], w_sel[k])
        return acc

    conv1 = conv(wcnn[:, :, :H])
    conv2 = conv(wcnn[:, :, H:])
    return conv2 * jax.nn.sigmoid(conv1)


# ==================================== main ====================================
if __name__ == "__main__":
    key = jax.random.PRNGKey(0)
    k_wih, k_whh, k_b, k_cnn, k_x = jax.random.split(key, 5)

    # LSTM params, stacked over layers (input size == hidden size for all layers):
    #   wih/whh: [L, H, 4H] (pre-transposed); b: [L, 1, 4H] (= b_ih + b_hh folded).
    wih = 0.1 * jax.random.normal(k_wih, (NUM_LAYERS, HIDDEN, 4 * HIDDEN), jnp.float32)
    whh = 0.1 * jax.random.normal(k_whh, (NUM_LAYERS, HIDDEN, 4 * HIDDEN), jnp.float32)
    b = 0.1 * jax.random.normal(k_b, (NUM_LAYERS, 1, 4 * HIDDEN), jnp.float32)

    # Gated CNN weights: torch Conv1d weight is [H_out, H_in, K]; stored here as
    # [K, H_in, 2*H_out] where [:, :, :H] is cnn1 (gate) and [:, :, H:] is cnn2.
    wcnn = 0.1 * jax.random.normal(k_cnn, (KERNEL, HIDDEN, 2 * HIDDEN), jnp.float32)

    x = jax.random.normal(k_x, (BATCH, SEQ, HIDDEN), jnp.float32)

    out = text_rcnn_forward(x, wih, whh, b, wcnn)
    out = jax.block_until_ready(out)

    ref = _ref_forward(x, wih, whh, b, wcnn)
    assert out.shape == (BATCH, SEQ, HIDDEN)
    assert jnp.allclose(out, ref, atol=1e-4, rtol=1e-4), "mismatch vs JAX reference"

    print("KERNEL_OK")
</pallas_src>

<mosaic_0001>
module attributes {stable_mosaic.version = 11 : i64} {
  func.func @_text_rcnn_kernel(%arg0: i32, %arg1: memref<64x32xf32, #tpu.memory_space<vmem>>, %arg2: memref<2x32x128xf32, #tpu.memory_space<vmem>>, %arg3: memref<2x32x128xf32, #tpu.memory_space<vmem>>, %arg4: memref<2x1x128xf32, #tpu.memory_space<vmem>>, %arg5: memref<96x64xf32, #tpu.memory_space<vmem>>, %arg6: memref<64x32xf32, #tpu.memory_space<vmem>>) attributes {dimension_semantics = [#tpu.dimension_semantics<arbitrary>], iteration_bounds = array<i64: 1>, scalar_prefetch = 0 : i64, scratch_operands = 0 : i64, tpu.core_type = #tpu.core_type<tc>, window_params = [{pipeline_mode = #tpu.pipeline_mode<synchronous>, transform_indices = @transform_0, window_bounds = array<i64: 64, 32>}, {pipeline_mode = #tpu.pipeline_mode<synchronous>, transform_indices = @transform_1, window_bounds = array<i64: 2, 32, 128>}, {pipeline_mode = #tpu.pipeline_mode<synchronous>, transform_indices = @transform_2, window_bounds = array<i64: 2, 32, 128>}, {pipeline_mode = #tpu.pipeline_mode<synchronous>, transform_indices = @transform_3, window_bounds = array<i64: 2, 1, 128>}, {pipeline_mode = #tpu.pipeline_mode<synchronous>, transform_indices = @transform_4, window_bounds = array<i64: 96, 64>}, {pipeline_mode = #tpu.pipeline_mode<synchronous>, transform_indices = @transform_5, window_bounds = array<i64: 64, 32>}]} {
    %c0 = arith.constant 0 : index
    %c0_0 = arith.constant 0 : index
    %0 = vector.load %arg1[%c0, %c0_0] : memref<64x32xf32, #tpu.memory_space<vmem>>, vector<64x32xf32>
    %c0_1 = arith.constant 0 : index
    %c0_2 = arith.constant 0 : index
    %c0_3 = arith.constant 0 : index
    %1 = vector.load %arg2[%c0_1, %c0_2, %c0_3] : memref<2x32x128xf32, #tpu.memory_space<vmem>>, vector<1x32x128xf32>
    %2 = vector.shape_cast %1 : vector<1x32x128xf32> to vector<32x128xf32>
    %cst = arith.constant dense<0.000000e+00> : vector<64x128xf32>
    %3 = tpu.matmul %0, %2, %cst {dimension_numbers = #tpu.dot_dimension_numbers<[1], [0], [0], [1], [0, 0, 1, 1], [], []>} : vector<64x32xf32>, vector<32x128xf32>, vector<64x128xf32> -> vector<64x128xf32>
    %c0_4 = arith.constant 0 : index
    %c0_5 = arith.constant 0 : index
    %c0_6 = arith.constant 0 : index
    %4 = vector.load %arg4[%c0_4, %c0_5, %c0_6] : memref<2x1x128xf32, #tpu.memory_space<vmem>>, vector<1x1x128xf32>
    %5 = vector.shape_cast %4 : vector<1x1x128xf32> to vector<1x128xf32>
    %6 = vector.broadcast %5 : vector<1x128xf32> to vector<64x128xf32>
    %7 = arith.addf %3, %6 : vector<64x128xf32>
    %c1 = arith.constant 1 : index
    %c0_7 = arith.constant 0 : index
    %c0_8 = arith.constant 0 : index
    %8 = vector.load %arg4[%c1, %c0_7, %c0_8] : memref<2x1x128xf32, #tpu.memory_space<vmem>>, vector<1x1x128xf32>
    %9 = vector.shape_cast %8 : vector<1x1x128xf32> to vector<1x128xf32>
    %cst_9 = arith.constant 0.000000e+00 : f32
    %10 = vector.broadcast %cst_9 : f32 to vector<32x128xf32>
    %c0_10 = arith.constant 0 : index
    %c0_11 = arith.constant 0 : index
    %c0_12 = arith.constant 0 : index
    %11 = vector.load %arg3[%c0_10, %c0_11, %c0_12] : memref<2x32x128xf32, #tpu.memory_space<vmem>>, vector<1x32x128xf32>
    %12 = vector.shape_cast %11 : vector<1x32x128xf32> to vector<32x128xf32>
    %c1_13 = arith.constant 1 : index
    %c0_14 = arith.constant 0 : index
    %c0_15 = arith.constant 0 : index
    %13 = vector.load %arg2[%c1_13, %c0_14, %c0_15] : memref<2x32x128xf32, #tpu.memory_space<vmem>>, vector<1x32x128xf32>
    %14 = vector.shape_cast %13 : vector<1x32x128xf32> to vector<32x128xf32>
    %15 = tpu.concatenate %12, %14 in 1 : vector<32x128xf32>, vector<32x128xf32> -> vector<32x256xf32>
    %c1_16 = arith.constant 1 : index
    %c0_17 = arith.constant 0 : index
    %c0_18 = arith.constant 0 : index
    %16 = vector.load %arg3[%c1_16, %c0_17, %c0_18] : memref<2x32x128xf32, #tpu.memory_space<vmem>>, vector<1x32x128xf32>
    %17 = vector.shape_cast %16 : vector<1x32x128xf32> to vector<32x128xf32>
    %18 = tpu.concatenate %10, %17 in 1 : vector<32x128xf32>, vector<32x128xf32> -> vector<32x256xf32>
    %19 = tpu.concatenate %15, %18 in 0 : vector<32x256xf32>, vector<32x256xf32> -> vector<64x256xf32>
    %cst_19 = arith.constant 0.000000e+00 : f32
    %20 = vector.broadcast %cst_19 : f32 to vector<8x32xf32>
    %cst_20 = arith.constant 0.000000e+00 : f32
    %21 = vector.broadcast %cst_20 : f32 to vector<8x32xf32>
    %cst_21 = arith.constant 0.000000e+00 : f32
    %22 = vector.broadcast %cst_21 : f32 to vector<8x32xf32>
    %23 = vector.extract_strided_slice %7 {offsets = [0, 0], sizes = [8, 128], strides = [1, 1]} : vector<64x128xf32> to vector<8x128xf32>
    %24 = arith.negf %23 : vector<8x128xf32>
    %25 = math.exp %24 : vector<8x128xf32>
    %cst_22 = arith.constant 1.000000e+00 : f32
    %26 = vector.broadcast %cst_22 : f32 to vector<8x128xf32>
    %27 = arith.addf %26, %25 : vector<8x128xf32>
    %28 = arith.divf %26, %27 : vector<8x128xf32>
    %29 = math.tanh %23 : vector<8x128xf32>
    %30 = vector.extract_strided_slice %28 {offsets = [0, 0], sizes = [8, 32], strides = [1, 1]} : vector<8x128xf32> to vector<8x32xf32>
    %31 = vector.extract_strided_slice %28 {offsets = [0, 32], sizes = [8, 32], strides = [1, 1]} : vector<8x128xf32> to vector<8x32xf32>
    %32 = vector.extract_strided_slice %29 {offsets = [0, 64], sizes = [8, 32], strides = [1, 1]} : vector<8x128xf32> to vector<8x32xf32>
    %33 = vector.extract_strided_slice %28 {offsets = [0, 96], sizes = [8, 32], strides = [1, 1]} : vector<8x128xf32> to vector<8x32xf32>
    %34 = arith.mulf %31, %20 : vector<8x32xf32>
    %35 = arith.mulf %30, %32 : vector<8x32xf32>
    %36 = arith.addf %34, %35 : vector<8x32xf32>
    %37 = math.tanh %36 : vector<8x32xf32>
    %38 = arith.mulf %33, %37 : vector<8x32xf32>
    %39 = tpu.concatenate %38, %21 in 1 : vector<8x32xf32>, vector<8x32xf32> -> vector<8x64xf32>
    %cst_23 = arith.constant dense<0.000000e+00> : vector<8x256xf32>
    %40 = tpu.matmul %39, %19, %cst_23 {dimension_numbers = #tpu.dot_dimension_numbers<[1], [0], [0], [1], [0, 0, 1, 1], [], []>} : vector<8x64xf32>, vector<64x256xf32>, vector<8x256xf32> -> vector<8x256xf32>
    %41 = vector.extract_strided_slice %40 {offsets = [0, 128], sizes = [8, 128], strides = [1, 1]} : vector<8x256xf32> to vector<8x128xf32>
    %42 = vector.broadcast %9 : vector<1x128xf32> to vector<8x128xf32>
    %43 = arith.addf %41, %42 : vector<8x128xf32>
    %44 = arith.negf %43 : vector<8x128xf32>
    %45 = math.exp %44 : vector<8x128xf32>
    %cst_24 = arith.constant 1.000000e+00 : f32
    %46 = vector.broadcast %cst_24 : f32 to vector<8x128xf32>
    %47 = arith.addf %46, %45 : vector<8x128xf32>
    %48 = arith.divf %46, %47 : vector<8x128xf32>
    %49 = math.tanh %43 : vector<8x128xf32>
    %50 = vector.extract_strided_slice %48 {offsets = [0, 0], sizes = [8, 32], strides = [1, 1]} : vector<8x128xf32> to vector<8x32xf32>
    %51 = vector.extract_strided_slice %48 {offsets = [0, 32], sizes = [8, 32], strides = [1, 1]} : vector<8x128xf32> to vector<8x32xf32>
    %52 = vector.extract_strided_slice %49 {offsets = [0, 64], sizes = [8, 32], strides = [1, 1]} : vector<8x128xf32> to vector<8x32xf32>
    %53 = vector.extract_strided_slice %48 {offsets = [0, 96], sizes = [8, 32], strides = [1, 1]} : vector<8x128xf32> to vector<8x32xf32>
    %54 = arith.mulf %51, %22 : vector<8x32xf32>
    %55 = arith.mulf %50, %52 : vector<8x32xf32>
    %56 = arith.addf %54, %55 : vector<8x32xf32>
    %57 = math.tanh %56 : vector<8x32xf32>
    %58 = arith.mulf %53, %57 : vector<8x32xf32>
    %59 = vector.extract_strided_slice %40 {offsets = [0, 0], sizes = [8, 128], strides = [1, 1]} : vector<8x256xf32> to vector<8x128xf32>
    %60 = vector.extract_strided_slice %7 {offsets = [8, 0], sizes = [8, 128], strides = [1, 1]} : vector<64x128xf32> to vector<8x128xf32>
    %61 = arith.addf %59, %60 : vector<8x128xf32>
    %62 = arith.negf %61 : vector<8x128xf32>
    %63 = math.exp %62 : vector<8x128xf32>
    %cst_25 = arith.constant 1.000000e+00 : f32
    %64 = vector.broadcast %cst_25 : f32 to vector<8x128xf32>
    %65 = arith.addf %64, %63 : vector<8x128xf32>
    %66 = arith.divf %64, %65 : vector<8x128xf32>
    %67 = math.tanh %61 : vector<8x128xf32>
    %68 = vector.extract_strided_slice %66 {offsets = [0, 0], sizes = [8, 32], strides = [1, 1]} : vector<8x128xf32> to vector<8x32xf32>
    %69 = vector.extract_strided_slice %66 {offsets = [0, 32], sizes = [8, 32], strides = [1, 1]} : vector<8x128xf32> to vector<8x32xf32>
    %70 = vector.extract_strided_slice %67 {offsets = [0, 64], sizes = [8, 32], strides = [1, 1]} : vector<8x128xf32> to vector<8x32xf32>
    %71 = vector.extract_strided_slice %66 {offsets = [0, 96], sizes = [8, 32], strides = [1, 1]} : vector<8x128xf32> to vector<8x32xf32>
    %72 = arith.mulf %69, %36 : vector<8x32xf32>
    %73 = arith.mulf %68, %70 : vector<8x32xf32>
    %74 = arith.addf %72, %73 : vector<8x32xf32>
    %75 = math.tanh %74 : vector<8x32xf32>
    %76 = arith.mulf %71, %75 : vector<8x32xf32>
    %77 = tpu.concatenate %76, %58 in 1 : vector<8x32xf32>, vector<8x32xf32> -> vector<8x64xf32>
    %cst_26 = arith.constant dense<0.000000e+00> : vector<8x256xf32>
    %78 = tpu.matmul %77, %19, %cst_26 {dimension_numbers = #tpu.dot_dimension_numbers<[1], [0], [0], [1], [0, 0, 1, 1], [], []>} : vector<8x64xf32>, vector<64x256xf32>, vector<8x256xf32> -> vector<8x256xf32>
    %79 = vector.extract_strided_slice %78 {offsets = [0, 128], sizes = [8, 128], strides = [1, 1]} : vector<8x256xf32> to vector<8x128xf32>
    %80 = vector.broadcast %9 : vector<1x128xf32> to vector<8x128xf32>
    %81 = arith.addf %79, %80 : vector<8x128xf32>
    %82 = arith.negf %81 : vector<8x128xf32>
    %83 = math.exp %82 : vector<8x128xf32>
    %cst_27 = arith.constant 1.000000e+00 : f32
    %84 = vector.broadcast %cst_27 : f32 to vector<8x128xf32>
    %85 = arith.addf %84, %83 : vector<8x128xf32>
    %86 = arith.divf %84, %85 : vector<8x128xf32>
    %87 = math.tanh %81 : vector<8x128xf32>
    %88 = vector.extract_strided_slice %86 {offsets = [0, 0], sizes = [8, 32], strides = [1, 1]} : vector<8x128xf32> to vector<8x32xf32>
    %89 = vector.extract_strided_slice %86 {offsets = [0, 32], sizes = [8, 32], strides = [1, 1]} : vector<8x128xf32> to vector<8x32xf32>
    %90 = vector.extract_strided_slice %87 {offsets = [0, 64], sizes = [8, 32], strides = [1, 1]} : vector<8x128xf32> to vector<8x32xf32>
    %91 = vector.extract_strided_slice %86 {offsets = [0, 96], sizes = [8, 32], strides = [1, 1]} : vector<8x128xf32> to vector<8x32xf32>
    %92 = arith.mulf %89, %56 : vector<8x32xf32>
    %93 = arith.mulf %88, %90 : vector<8x32xf32>
    %94 = arith.addf %92, %93 : vector<8x32xf32>
    %95 = math.tanh %94 : vector<8x32xf32>
    %96 = arith.mulf %91, %95 : vector<8x32xf32>
    %97 = vector.extract_strided_slice %78 {offsets = [0, 0], sizes = [8, 128], strides = [1, 1]} : vector<8x256xf32> to vector<8x128xf32>
    %98 = vector.extract_strided_slice %7 {offsets = [16, 0], sizes = [8, 128], strides = [1, 1]} : vector<64x128xf32> to vector<8x128xf32>
    %99 = arith.addf %97, %98 : vector<8x128xf32>
    %100 = arith.negf %99 : vector<8x128xf32>
    %101 = math.exp %100 : vector<8x128xf32>
    %cst_28 = arith.constant 1.000000e+00 : f32
    %102 = vector.broadcast %cst_28 : f32 to vector<8x128xf32>
    %103 = arith.addf %102, %101 : vector<8x128xf32>
    %104 = arith.divf %102, %103 : vector<8x128xf32>
    %105 = math.tanh %99 : vector<8x128xf32>
    %106 = vector.extract_strided_slice %104 {offsets = [0, 0], sizes = [8, 32], strides = [1, 1]} : vector<8x128xf32> to vector<8x32xf32>
    %107 = vector.extract_strided_slice %104 {offsets = [0, 32], sizes = [8, 32], strides = [1, 1]} : vector<8x128xf32> to vector<8x32xf32>
    %108 = vector.extract_strided_slice %105 {offsets = [0, 64], sizes = [8, 32], strides = [1, 1]} : vector<8x128xf32> to vector<8x32xf32>
    %109 = vector.extract_strided_slice %104 {offsets = [0, 96], sizes = [8, 32], strides = [1, 1]} : vector<8x128xf32> to vector<8x32xf32>
    %110 = arith.mulf %107, %74 : vector<8x32xf32>
    %111 = arith.mulf %106, %108 : vector<8x32xf32>
    %112 = arith.addf %110, %111 : vector<8x32xf32>
    %113 = math.tanh %112 : vector<8x32xf32>
    %114 = arith.mulf %109, %113 : vector<8x32xf32>
    %115 = tpu.concatenate %114, %96 in 1 : vector<8x32xf32>, vector<8x32xf32> -> vector<8x64xf32>
    %cst_29 = arith.constant dense<0.000000e+00> : vector<8x256xf32>
    %116 = tpu.matmul %115, %19, %cst_29 {dimension_numbers = #tpu.dot_dimension_numbers<[1], [0], [0], [1], [0, 0, 1, 1], [], []>} : vector<8x64xf32>, vector<64x256xf32>, vector<8x256xf32> -> vector<8x256xf32>
    %117 = vector.extract_strided_slice %116 {offsets = [0, 128], sizes = [8, 128], strides = [1, 1]} : vector<8x256xf32> to vector<8x128xf32>
    %118 = vector.broadcast %9 : vector<1x128xf32> to vector<8x128xf32>
    %119 = arith.addf %117, %118 : vector<8x128xf32>
    %120 = arith.negf %119 : vector<8x128xf32>
    %121 = math.exp %120 : vector<8x128xf32>
    %cst_30 = arith.constant 1.000000e+00 : f32
    %122 = vector.broadcast %cst_30 : f32 to vector<8x128xf32>
    %123 = arith.addf %122, %121 : vector<8x128xf32>
    %124 = arith.divf %122, %123 : vector<8x128xf32>
    %125 = math.tanh %119 : vector<8x128xf32>
    %126 = vector.extract_strided_slice %124 {offsets = [0, 0], sizes = [8, 32], strides = [1, 1]} : vector<8x128xf32> to vector<8x32xf32>
    %127 = vector.extract_strided_slice %124 {offsets = [0, 32], sizes = [8, 32], strides = [1, 1]} : vector<8x128xf32> to vector<8x32xf32>
    %128 = vector.extract_strided_slice %125 {offsets = [0, 64], sizes = [8, 32], strides = [1, 1]} : vector<8x128xf32> to vector<8x32xf32>
    %129 = vector.extract_strided_slice %124 {offsets = [0, 96], sizes = [8, 32], strides = [1, 1]} : vector<8x128xf32> to vector<8x32xf32>
    %130 = arith.mulf %127, %94 : vector<8x32xf32>
    %131 = arith.mulf %126, %128 : vector<8x32xf32>
    %132 = arith.addf %130, %131 : vector<8x32xf32>
    %133 = math.tanh %132 : vector<8x32xf32>
    %134 = arith.mulf %129, %133 : vector<8x32xf32>
    %135 = vector.extract_strided_slice %116 {offsets = [0, 0], sizes = [8, 128], strides = [1, 1]} : vector<8x256xf32> to vector<8x128xf32>
    %136 = vector.extract_strided_slice %7 {offsets = [24, 0], sizes = [8, 128], strides = [1, 1]} : vector<64x128xf32> to vector<8x128xf32>
    %137 = arith.addf %135, %136 : vector<8x128xf32>
    %138 = arith.negf %137 : vector<8x128xf32>
    %139 = math.exp %138 : vector<8x128xf32>
    %cst_31 = arith.constant 1.000000e+00 : f32
    %140 = vector.broadcast %cst_31 : f32 to vector<8x128xf32>
    %141 = arith.addf %140, %139 : vector<8x128xf32>
    %142 = arith.divf %140, %141 : vector<8x128xf32>
    %143 = math.tanh %137 : vector<8x128xf32>
    %144 = vector.extract_strided_slice %142 {offsets = [0, 0], sizes = [8, 32], strides = [1, 1]} : vector<8x128xf32> to vector<8x32xf32>
    %145 = vector.extract_strided_slice %142 {offsets = [0, 32], sizes = [8, 32], strides = [1, 1]} : vector<8x128xf32> to vector<8x32xf32>
    %146 = vector.extract_strided_slice %143 {offsets = [0, 64], sizes = [8, 32], strides = [1, 1]} : vector<8x128xf32> to vector<8x32xf32>
    %147 = vector.extract_strided_slice %142 {offsets = [0, 96], sizes = [8, 32], strides = [1, 1]} : vector<8x128xf32> to vector<8x32xf32>
    %148 = arith.mulf %145, %112 : vector<8x32xf32>
    %149 = arith.mulf %144, %146 : vector<8x32xf32>
    %150 = arith.addf %148, %149 : vector<8x32xf32>
    %151 = math.tanh %150 : vector<8x32xf32>
    %152 = arith.mulf %147, %151 : vector<8x32xf32>
    %153 = tpu.concatenate %152, %134 in 1 : vector<8x32xf32>, vector<8x32xf32> -> vector<8x64xf32>
    %cst_32 = arith.constant dense<0.000000e+00> : vector<8x256xf32>
    %154 = tpu.matmul %153, %19, %cst_32 {dimension_numbers = #tpu.dot_dimension_numbers<[1], [0], [0], [1], [0, 0, 1, 1], [], []>} : vector<8x64xf32>, vector<64x256xf32>, vector<8x256xf32> -> vector<8x256xf32>
    %155 = vector.extract_strided_slice %154 {offsets = [0, 128], sizes = [8, 128], strides = [1, 1]} : vector<8x256xf32> to vector<8x128xf32>
    %156 = vector.broadcast %9 : vector<1x128xf32> to vector<8x128xf32>
    %157 = arith.addf %155, %156 : vector<8x128xf32>
    %158 = arith.negf %157 : vector<8x128xf32>
    %159 = math.exp %158 : vector<8x128xf32>
    %cst_33 = arith.constant 1.000000e+00 : f32
    %160 = vector.broadcast %cst_33 : f32 to vector<8x128xf32>
    %161 = arith.addf %160, %159 : vector<8x128xf32>
    %162 = arith.divf %160, %161 : vector<8x128xf32>
    %163 = math.tanh %157 : vector<8x128xf32>
    %164 = vector.extract_strided_slice %162 {offsets = [0, 0], sizes = [8, 32], strides = [1, 1]} : vector<8x128xf32> to vector<8x32xf32>
    %165 = vector.extract_strided_slice %162 {offsets = [0, 32], sizes = [8, 32], strides = [1, 1]} : vector<8x128xf32> to vector<8x32xf32>
    %166 = vector.extract_strided_slice %163 {offsets = [0, 64], sizes = [8, 32], strides = [1, 1]} : vector<8x128xf32> to vector<8x32xf32>
    %167 = vector.extract_strided_slice %162 {offsets = [0, 96], sizes = [8, 32], strides = [1, 1]} : vector<8x128xf32> to vector<8x32xf32>
    %168 = arith.mulf %165, %132 : vector<8x32xf32>
    %169 = arith.mulf %164, %166 : vector<8x32xf32>
    %170 = arith.addf %168, %169 : vector<8x32xf32>
    %171 = math.tanh %170 : vector<8x32xf32>
    %172 = arith.mulf %167, %171 : vector<8x32xf32>
    %173 = vector.extract_strided_slice %154 {offsets = [0, 0], sizes = [8, 128], strides = [1, 1]} : vector<8x256xf32> to vector<8x128xf32>
    %174 = vector.extract_strided_slice %7 {offsets = [32, 0], sizes = [8, 128], strides = [1, 1]} : vector<64x128xf32> to vector<8x128xf32>
    %175 = arith.addf %173, %174 : vector<8x128xf32>
    %176 = arith.negf %175 : vector<8x128xf32>
    %177 = math.exp %176 : vector<8x128xf32>
    %cst_34 = arith.constant 1.000000e+00 : f32
    %178 = vector.broadcast %cst_34 : f32 to vector<8x128xf32>
    %179 = arith.addf %178, %177 : vector<8x128xf32>
    %180 = arith.divf %178, %179 : vector<8x128xf32>
    %181 = math.tanh %175 : vector<8x128xf32>
    %182 = vector.extract_strided_slice %180 {offsets = [0, 0], sizes = [8, 32], strides = [1, 1]} : vector<8x128xf32> to vector<8x32xf32>
    %183 = vector.extract_strided_slice %180 {offsets = [0, 32], sizes = [8, 32], strides = [1, 1]} : vector<8x128xf32> to vector<8x32xf32>
    %184 = vector.extract_strided_slice %181 {offsets = [0, 64], sizes = [8, 32], strides = [1, 1]} : vector<8x128xf32> to vector<8x32xf32>
    %185 = vector.extract_strided_slice %180 {offsets = [0, 96], sizes = [8, 32], strides = [1, 1]} : vector<8x128xf32> to vector<8x32xf32>
    %186 = arith.mulf %183, %150 : vector<8x32xf32>
    %187 = arith.mulf %182, %184 : vector<8x32xf32>
    %188 = arith.addf %186, %187 : vector<8x32xf32>
    %189 = math.tanh %188 : vector<8x32xf32>
    %190 = arith.mulf %185, %189 : vector<8x32xf32>
    %191 = tpu.concatenate %190, %172 in 1 : vector<8x32xf32>, vector<8x32xf32> -> vector<8x64xf32>
    %cst_35 = arith.constant dense<0.000000e+00> : vector<8x256xf32>
    %192 = tpu.matmul %191, %19, %cst_35 {dimension_numbers = #tpu.dot_dimension_numbers<[1], [0], [0], [1], [0, 0, 1, 1], [], []>} : vector<8x64xf32>, vector<64x256xf32>, vector<8x256xf32> -> vector<8x256xf32>
    %193 = vector.extract_strided_slice %192 {offsets = [0, 128], sizes = [8, 128], strides = [1, 1]} : vector<8x256xf32> to vector<8x128xf32>
    %194 = vector.broadcast %9 : vector<1x128xf32> to vector<8x128xf32>
    %195 = arith.addf %193, %194 : vector<8x128xf32>
    %196 = arith.negf %195 : vector<8x128xf32>
    %197 = math.exp %196 : vector<8x128xf32>
    %cst_36 = arith.constant 1.000000e+00 : f32
    %198 = vector.broadcast %cst_36 : f32 to vector<8x128xf32>
    %199 = arith.addf %198, %197 : vector<8x128xf32>
    %200 = arith.divf %198, %199 : vector<8x128xf32>
    %201 = math.tanh %195 : vector<8x128xf32>
    %202 = vector.extract_strided_slice %200 {offsets = [0, 0], sizes = [8, 32], strides = [1, 1]} : vector<8x128xf32> to vector<8x32xf32>
    %203 = vector.extract_strided_slice %200 {offsets = [0, 32], sizes = [8, 32], strides = [1, 1]} : vector<8x128xf32> to vector<8x32xf32>
    %204 = vector.extract_strided_slice %201 {offsets = [0, 64], sizes = [8, 32], strides = [1, 1]} : vector<8x128xf32> to vector<8x32xf32>
    %205 = vector.extract_strided_slice %200 {offsets = [0, 96], sizes = [8, 32], strides = [1, 1]} : vector<8x128xf32> to vector<8x32xf32>
    %206 = arith.mulf %203, %170 : vector<8x32xf32>
    %207 = arith.mulf %202, %204 : vector<8x32xf32>
    %208 = arith.addf %206, %207 : vector<8x32xf32>
    %209 = math.tanh %208 : vector<8x32xf32>
    %210 = arith.mulf %205, %209 : vector<8x32xf32>
    %211 = vector.extract_strided_slice %192 {offsets = [0, 0], sizes = [8, 128], strides = [1, 1]} : vector<8x256xf32> to vector<8x128xf32>
    %212 = vector.extract_strided_slice %7 {offsets = [40, 0], sizes = [8, 128], strides = [1, 1]} : vector<64x128xf32> to vector<8x128xf32>
    %213 = arith.addf %211, %212 : vector<8x128xf32>
    %214 = arith.negf %213 : vector<8x128xf32>
    %215 = math.exp %214 : vector<8x128xf32>
    %cst_37 = arith.constant 1.000000e+00 : f32
    %216 = vector.broadcast %cst_37 : f32 to vector<8x128xf32>
    %217 = arith.addf %216, %215 : vector<8x128xf32>
    %218 = arith.divf %216, %217 : vector<8x128xf32>
    %219 = math.tanh %213 : vector<8x128xf32>
    %220 = vector.extract_strided_slice %218 {offsets = [0, 0], sizes = [8, 32], strides = [1, 1]} : vector<8x128xf32> to vector<8x32xf32>
    %221 = vector.extract_strided_slice %218 {offsets = [0, 32], sizes = [8, 32], strides = [1, 1]} : vector<8x128xf32> to vector<8x32xf32>
    %222 = vector.extract_strided_slice %219 {offsets = [0, 64], sizes = [8, 32], strides = [1, 1]} : vector<8x128xf32> to vector<8x32xf32>
    %223 = vector.extract_strided_slice %218 {offsets = [0, 96], sizes = [8, 32], strides = [1, 1]} : vector<8x128xf32> to vector<8x32xf32>
    %224 = arith.mulf %221, %188 : vector<8x32xf32>
    %225 = arith.mulf %220, %222 : vector<8x32xf32>
    %226 = arith.addf %224, %225 : vector<8x32xf32>
    %227 = math.tanh %226 : vector<8x32xf32>
    %228 = arith.mulf %223, %227 : vector<8x32xf32>
    %229 = tpu.concatenate %228, %210 in 1 : vector<8x32xf32>, vector<8x32xf32> -> vector<8x64xf32>
    %cst_38 = arith.constant dense<0.000000e+00> : vector<8x256xf32>
    %230 = tpu.matmul %229, %19, %cst_38 {dimension_numbers = #tpu.dot_dimension_numbers<[1], [0], [0], [1], [0, 0, 1, 1], [], []>} : vector<8x64xf32>, vector<64x256xf32>, vector<8x256xf32> -> vector<8x256xf32>
    %231 = vector.extract_strided_slice %230 {offsets = [0, 128], sizes = [8, 128], strides = [1, 1]} : vector<8x256xf32> to vector<8x128xf32>
    %232 = vector.broadcast %9 : vector<1x128xf32> to vector<8x128xf32>
    %233 = arith.addf %231, %232 : vector<8x128xf32>
    %234 = arith.negf %233 : vector<8x128xf32>
    %235 = math.exp %234 : vector<8x128xf32>
    %cst_39 = arith.constant 1.000000e+00 : f32
    %236 = vector.broadcast %cst_39 : f32 to vector<8x128xf32>
    %237 = arith.addf %236, %235 : vector<8x128xf32>
    %238 = arith.divf %236, %237 : vector<8x128xf32>
    %239 = math.tanh %233 : vector<8x128xf32>
    %240 = vector.extract_strided_slice %238 {offsets = [0, 0], sizes = [8, 32], strides = [1, 1]} : vector<8x128xf32> to vector<8x32xf32>
    %241 = vector.extract_strided_slice %238 {offsets = [0, 32], sizes = [8, 32], strides = [1, 1]} : vector<8x128xf32> to vector<8x32xf32>
    %242 = vector.extract_strided_slice %239 {offsets = [0, 64], sizes = [8, 32], strides = [1, 1]} : vector<8x128xf32> to vector<8x32xf32>
    %243 = vector.extract_strided_slice %238 {offsets = [0, 96], sizes = [8, 32], strides = [1, 1]} : vector<8x128xf32> to vector<8x32xf32>
    %244 = arith.mulf %241, %208 : vector<8x32xf32>
    %245 = arith.mulf %240, %242 : vector<8x32xf32>
    %246 = arith.addf %244, %245 : vector<8x32xf32>
    %247 = math.tanh %246 : vector<8x32xf32>
    %248 = arith.mulf %243, %247 : vector<8x32xf32>
    %249 = vector.extract_strided_slice %230 {offsets = [0, 0], sizes = [8, 128], strides = [1, 1]} : vector<8x256xf32> to vector<8x128xf32>
    %250 = vector.extract_strided_slice %7 {offsets = [48, 0], sizes = [8, 128], strides = [1, 1]} : vector<64x128xf32> to vector<8x128xf32>
    %251 = arith.addf %249, %250 : vector<8x128xf32>
    %252 = arith.negf %251 : vector<8x128xf32>
    %253 = math.exp %252 : vector<8x128xf32>
    %cst_40 = arith.constant 1.000000e+00 : f32
    %254 = vector.broadcast %cst_40 : f32 to vector<8x128xf32>
    %255 = arith.addf %254, %253 : vector<8x128xf32>
    %256 = arith.divf %254, %255 : vector<8x128xf32>
    %257 = math.tanh %251 : vector<8x128xf32>
    %258 = vector.extract_strided_slice %256 {offsets = [0, 0], sizes = [8, 32], strides = [1, 1]} : vector<8x128xf32> to vector<8x32xf32>
    %259 = vector.extract_strided_slice %256 {offsets = [0, 32], sizes = [8, 32], strides = [1, 1]} : vector<8x128xf32> to vector<8x32xf32>
    %260 = vector.extract_strided_slice %257 {offsets = [0, 64], sizes = [8, 32], strides = [1, 1]} : vector<8x128xf32> to vector<8x32xf32>
    %261 = vector.extract_strided_slice %256 {offsets = [0, 96], sizes = [8, 32], strides = [1, 1]} : vector<8x128xf32> to vector<8x32xf32>
    %262 = arith.mulf %259, %226 : vector<8x32xf32>
    %263 = arith.mulf %258, %260 : vector<8x32xf32>
    %264 = arith.addf %262, %263 : vector<8x32xf32>
    %265 = math.tanh %264 : vector<8x32xf32>
    %266 = arith.mulf %261, %265 : vector<8x32xf32>
    %267 = tpu.concatenate %266, %248 in 1 : vector<8x32xf32>, vector<8x32xf32> -> vector<8x64xf32>
    %cst_41 = arith.constant dense<0.000000e+00> : vector<8x256xf32>
    %268 = tpu.matmul %267, %19, %cst_41 {dimension_numbers = #tpu.dot_dimension_numbers<[1], [0], [0], [1], [0, 0, 1, 1], [], []>} : vector<8x64xf32>, vector<64x256xf32>, vector<8x256xf32> -> vector<8x256xf32>
    %269 = vector.extract_strided_slice %268 {offsets = [0, 128], sizes = [8, 128], strides = [1, 1]} : vector<8x256xf32> to vector<8x128xf32>
    %270 = vector.broadcast %9 : vector<1x128xf32> to vector<8x128xf32>
    %271 = arith.addf %269, %270 : vector<8x128xf32>
    %272 = arith.negf %271 : vector<8x128xf32>
    %273 = math.exp %272 : vector<8x128xf32>
    %cst_42 = arith.constant 1.000000e+00 : f32
    %274 = vector.broadcast %cst_42 : f32 to vector<8x128xf32>
    %275 = arith.addf %274, %273 : vector<8x128xf32>
    %276 = arith.divf %274, %275 : vector<8x128xf32>
    %277 = math.tanh %271 : vector<8x128xf32>
    %278 = vector.extract_strided_slice %276 {offsets = [0, 0], sizes = [8, 32], strides = [1, 1]} : vector<8x128xf32> to vector<8x32xf32>
    %279 = vector.extract_strided_slice %276 {offsets = [0, 32], sizes = [8, 32], strides = [1, 1]} : vector<8x128xf32> to vector<8x32xf32>
    %280 = vector.extract_strided_slice %277 {offsets = [0, 64], sizes = [8, 32], strides = [1, 1]} : vector<8x128xf32> to vector<8x32xf32>
    %281 = vector.extract_strided_slice %276 {offsets = [0, 96], sizes = [8, 32], strides = [1, 1]} : vector<8x128xf32> to vector<8x32xf32>
    %282 = arith.mulf %279, %246 : vector<8x32xf32>
    %283 = arith.mulf %278, %280 : vector<8x32xf32>
    %284 = arith.addf %282, %283 : vector<8x32xf32>
    %285 = math.tanh %284 : vector<8x32xf32>
    %286 = arith.mulf %281, %285 : vector<8x32xf32>
    %287 = vector.extract_strided_slice %268 {offsets = [0, 0], sizes = [8, 128], strides = [1, 1]} : vector<8x256xf32> to vector<8x128xf32>
    %288 = vector.extract_strided_slice %7 {offsets = [56, 0], sizes = [8, 128], strides = [1, 1]} : vector<64x128xf32> to vector<8x128xf32>
    %289 = arith.addf %287, %288 : vector<8x128xf32>
    %290 = arith.negf %289 : vector<8x128xf32>
    %291 = math.exp %290 : vector<8x128xf32>
    %cst_43 = arith.constant 1.000000e+00 : f32
    %292 = vector.broadcast %cst_43 : f32 to vector<8x128xf32>
    %293 = arith.addf %292, %291 : vector<8x128xf32>
    %294 = arith.divf %292, %293 : vector<8x128xf32>
    %295 = math.tanh %289 : vector<8x128xf32>
    %296 = vector.extract_strided_slice %294 {offsets = [0, 0], sizes = [8, 32], strides = [1, 1]} : vector<8x128xf32> to vector<8x32xf32>
    %297 = vector.extract_strided_slice %294 {offsets = [0, 32], sizes = [8, 32], strides = [1, 1]} : vector<8x128xf32> to vector<8x32xf32>
    %298 = vector.extract_strided_slice %295 {offsets = [0, 64], sizes = [8, 32], strides = [1, 1]} : vector<8x128xf32> to vector<8x32xf32>
    %299 = vector.extract_strided_slice %294 {offsets = [0, 96], sizes = [8, 32], strides = [1, 1]} : vector<8x128xf32> to vector<8x32xf32>
    %300 = arith.mulf %297, %264 : vector<8x32xf32>
    %301 = arith.mulf %296, %298 : vector<8x32xf32>
    %302 = arith.addf %300, %301 : vector<8x32xf32>
    %303 = math.tanh %302 : vector<8x32xf32>
    %304 = arith.mulf %299, %303 : vector<8x32xf32>
    %305 = tpu.concatenate %304, %286 in 1 : vector<8x32xf32>, vector<8x32xf32> -> vector<8x64xf32>
    %cst_44 = arith.constant dense<0.000000e+00> : vector<8x256xf32>
    %306 = tpu.matmul %305, %19, %cst_44 {dimension_numbers = #tpu.dot_dimension_numbers<[1], [0], [0], [1], [0, 0, 1, 1], [], []>} : vector<8x64xf32>, vector<64x256xf32>, vector<8x256xf32> -> vector<8x256xf32>
    %307 = vector.extract_strided_slice %306 {offsets = [0, 128], sizes = [8, 128], strides = [1, 1]} : vector<8x256xf32> to vector<8x128xf32>
    %308 = vector.broadcast %9 : vector<1x128xf32> to vector<8x128xf32>
    %309 = arith.addf %307, %308 : vector<8x128xf32>
    %310 = arith.negf %309 : vector<8x128xf32>
    %311 = math.exp %310 : vector<8x128xf32>
    %cst_45 = arith.constant 1.000000e+00 : f32
    %312 = vector.broadcast %cst_45 : f32 to vector<8x128xf32>
    %313 = arith.addf %312, %311 : vector<8x128xf32>
    %314 = arith.divf %312, %313 : vector<8x128xf32>
    %315 = math.tanh %309 : vector<8x128xf32>
    %316 = vector.extract_strided_slice %314 {offsets = [0, 0], sizes = [8, 32], strides = [1, 1]} : vector<8x128xf32> to vector<8x32xf32>
    %317 = vector.extract_strided_slice %314 {offsets = [0, 32], sizes = [8, 32], strides = [1, 1]} : vector<8x128xf32> to vector<8x32xf32>
    %318 = vector.extract_strided_slice %315 {offsets = [0, 64], sizes = [8, 32], strides = [1, 1]} : vector<8x128xf32> to vector<8x32xf32>
    %319 = vector.extract_strided_slice %314 {offsets = [0, 96], sizes = [8, 32], strides = [1, 1]} : vector<8x128xf32> to vector<8x32xf32>
    %320 = arith.mulf %317, %284 : vector<8x32xf32>
    %321 = arith.mulf %316, %318 : vector<8x32xf32>
    %322 = arith.addf %320, %321 : vector<8x32xf32>
    %323 = math.tanh %322 : vector<8x32xf32>
    %324 = arith.mulf %319, %323 : vector<8x32xf32>
    %325 = tpu.concatenate %58, %96, %134, %172, %210, %248, %286, %324 in 0 : vector<8x32xf32>, vector<8x32xf32>, vector<8x32xf32>, vector<8x32xf32>, vector<8x32xf32>, vector<8x32xf32>, vector<8x32xf32>, vector<8x32xf32> -> vector<64x32xf32>
    %cst_46 = arith.constant 0.000000e+00 : f32
    %326 = vector.broadcast %cst_46 : f32 to vector<8x32xf32>
    %327 = tpu.concatenate %326, %325, %326 in 0 : vector<8x32xf32>, vector<64x32xf32>, vector<8x32xf32> -> vector<80x32xf32>
    %328 = vector.extract_strided_slice %327 {offsets = [0, 0], sizes = [64, 32], strides = [1, 1]} : vector<80x32xf32> to vector<64x32xf32>
    %329 = vector.extract_strided_slice %327 {offsets = [8, 0], sizes = [64, 32], strides = [1, 1]} : vector<80x32xf32> to vector<64x32xf32>
    %330 = vector.extract_strided_slice %327 {offsets = [16, 0], sizes = [64, 32], strides = [1, 1]} : vector<80x32xf32> to vector<64x32xf32>
    %331 = tpu.concatenate %328, %329, %330 in 1 : vector<64x32xf32>, vector<64x32xf32>, vector<64x32xf32> -> vector<64x96xf32>
    %c0_47 = arith.constant 0 : index
    %c0_48 = arith.constant 0 : index
    %332 = vector.load %arg5[%c0_47, %c0_48] : memref<96x64xf32, #tpu.memory_space<vmem>>, vector<96x64xf32>
    %cst_49 = arith.constant dense<0.000000e+00> : vector<64x64xf32>
    %333 = tpu.matmul %331, %332, %cst_49 {dimension_numbers = #tpu.dot_dimension_numbers<[1], [0], [0], [1], [0, 0, 1, 1], [], []>} : vector<64x96xf32>, vector<96x64xf32>, vector<64x64xf32> -> vector<64x64xf32>
    %334 = vector.extract_strided_slice %333 {offsets = [0, 32], sizes = [64, 32], strides = [1, 1]} : vector<64x64xf32> to vector<64x32xf32>
    %335 = vector.extract_strided_slice %333 {offsets = [0, 0], sizes = [64, 32], strides = [1, 1]} : vector<64x64xf32> to vector<64x32xf32>
    %336 = arith.negf %335 : vector<64x32xf32>
    %337 = math.exp %336 : vector<64x32xf32>
    %cst_50 = arith.constant 1.000000e+00 : f32
    %338 = vector.broadcast %cst_50 : f32 to vector<64x32xf32>
    %339 = arith.addf %338, %337 : vector<64x32xf32>
    %340 = arith.divf %338, %339 : vector<64x32xf32>
    %341 = arith.mulf %334, %340 : vector<64x32xf32>
    %c0_51 = arith.constant 0 : index
    %c0_52 = arith.constant 0 : index
    %342 = vector.load %arg6[%c0_51, %c0_52] : memref<64x32xf32, #tpu.memory_space<vmem>>, vector<64x32xf32>
    tpu.vector_store %arg6[%c0_51, %c0_52], %341 {strides = array<i32>} : memref<64x32xf32, #tpu.memory_space<vmem>>, vector<64x32xf32>,
    return
  }
  func.func @transform_0(%arg0: i32) -> (i32, i32) {
    %c0_i32 = arith.constant 0 : i32
    %c0_i32_0 = arith.constant 0 : i32
    %c0_i32_1 = arith.constant 0 : i32
    return %c0_i32, %c0_i32_0 : i32, i32
  }
  func.func @transform_1(%arg0: i32) -> (i32, i32, i32) {
    %c0_i32 = arith.constant 0 : i32
    %c0_i32_0 = arith.constant 0 : i32
    %c0_i32_1 = arith.constant 0 : i32
    %c0_i32_2 = arith.constant 0 : i32
    return %c0_i32, %c0_i32_0, %c0_i32_1 : i32, i32, i32
  }
  func.func @transform_2(%arg0: i32) -> (i32, i32, i32) {
    %c0_i32 = arith.constant 0 : i32
    %c0_i32_0 = arith.constant 0 : i32
    %c0_i32_1 = arith.constant 0 : i32
    %c0_i32_2 = arith.constant 0 : i32
    return %c0_i32, %c0_i32_0, %c0_i32_1 : i32, i32, i32
  }
  func.func @transform_3(%arg0: i32) -> (i32, i32, i32) {
    %c0_i32 = arith.constant 0 : i32
    %c0_i32_0 = arith.constant 0 : i32
    %c0_i32_1 = arith.constant 0 : i32
    %c0_i32_2 = arith.constant 0 : i32
    return %c0_i32, %c0_i32_0, %c0_i32_1 : i32, i32, i32
  }
  func.func @transform_4(%arg0: i32) -> (i32, i32) {
    %c0_i32 = arith.constant 0 : i32
    %c0_i32_0 = arith.constant 0 : i32
    %c0_i32_1 = arith.constant 0 : i32
    return %c0_i32, %c0_i32_0 : i32, i32
  }
  func.func @transform_5(%arg0: i32) -> (i32, i32) {
    %c0_i32 = arith.constant 0 : i32
    %c0_i32_0 = arith.constant 0 : i32
    %c0_i32_1 = arith.constant 0 : i32
    return %c0_i32, %c0_i32_0 : i32, i32
  }
}

</mosaic_0001>

<llo_original>
// kernel: text_rcnn_forward.1
$region0: #{text_rcnn_forward.1}
  #allocation0 [shape = 'u32[]', space=smem, size = 0x4, offset = 0x4, fixed_abs, tag = 'smem constant byte address 0x4 - core index']
  #allocation1 [shape = 'u32[144,128]{1,0:T(1,128)}', space=vmem, size = 0x12000, scoped, tag = 'internal scratch']
  %s0 = inlined_call_operand.vmem [shape: f32[64,32], index: 0, kind: input, shape index: {}]
  %s1 = inlined_call_operand.vmem [shape: f32[2,32,128], index: 1, kind: input, shape index: {}]
  %s2 = inlined_call_operand.hbm [shape: f32[2,32,128], index: 2, kind: input, shape index: {}]
  %s3 = inlined_call_operand.vmem [shape: f32[2,1,128], index: 3, kind: input, shape index: {}]
  %s4 = inlined_call_operand.vmem [shape: f32[96,64], index: 4, kind: input, shape index: {}]
  %s5 = inlined_call_operand.vmem [shape: f32[64,32], index: 5, kind: output, shape index: {}]
  %s6 = sld [smem:[#allocation0]]
  $region34: #{text_rcnn_forward.1} parent=0
    _
  %s8 = ssub.s32 1, %s6
  %s9 = scalar_select 0, %s8, %s6
  $region1: #{text_rcnn_forward.1} parent=0
    #allocation2 [shape = 'u8[32768]{0}', space=vmem, size = 0x8000, scoped, tag = 'input window, operand 2, single buffered']
    #allocation3 [shape = 's32[1]{0}', space=sflag, size = 0x4, scoped, tag = 'scoped memory for text_rcnn_forward.1']
    %10 = vsyncpa [#allocation3], 0
    // Predicated region
    $region2: #{text_rcnn_forward.1} parent=1 // pred_check
      _
    $region3: #{text_rcnn_forward.1} parent=1 // pred_check_branch
      %12 = sbr.rel (0) target = $region5
    $region4: #{text_rcnn_forward.1} parent=1 // pred_region
      _
    $region5: #{text_rcnn_forward.1} parent=1 // pred_fallthru
      _
    // Predicated region
    $region6: #{text_rcnn_forward.1} parent=1 // pred_check
      _
    $region7: #{text_rcnn_forward.1} parent=1 // pred_check_branch
      %14 = sbr.rel (0) target = $region9
    $region8: #{text_rcnn_forward.1} parent=1 // pred_region
      _
    $region9: #{text_rcnn_forward.1} parent=1 // pred_fallthru
      _
    // Predicated region
    $region10: #{text_rcnn_forward.1} parent=1 // pred_check
      _
    $region11: #{text_rcnn_forward.1} parent=1 // pred_check_branch
      %16 = sbr.rel (0) target = $region13
    $region12: #{text_rcnn_forward.1} parent=1 // pred_region
      %s18 = ssub.s32 1024, 1024
      %19 = vsyncadd [#allocation3], %s18
      %s20 = sshll.u32 [#allocation2], 4
      %s21 = int_to_ptr.vmem [resolvable:$true] %s20
      %26 = dma.hbm_to_vmem [thread:$0]  %s2, 1024, %s21, [#allocation3], 128, 128, 8
    $region13: #{text_rcnn_forward.1} parent=1 // pred_fallthru
      _
    // Predicated region
    $region14: #{text_rcnn_forward.1} parent=1 // pred_check
      _
    $region15: #{text_rcnn_forward.1} parent=1 // pred_check_branch
      %28 = sbr.rel (0) target = $region17
    $region16: #{text_rcnn_forward.1} parent=1 // pred_region
      _
    $region17: #{text_rcnn_forward.1} parent=1 // pred_fallthru
      _
    // Predicated region
    $region18: #{text_rcnn_forward.1} parent=1 // pred_check
      _
    $region19: #{text_rcnn_forward.1} parent=1 // pred_check_branch
      %30 = sbr.rel (0) target = $region21
    $region20: #{text_rcnn_forward.1} parent=1 // pred_region
      _
    $region21: #{text_rcnn_forward.1} parent=1 // pred_fallthru
      _
    // Predicated region
    $region22: #{text_rcnn_forward.1} parent=1 // pred_check
      _
    $region23: #{text_rcnn_forward.1} parent=1 // pred_check_branch
      %32 = sbr.rel (0) target = $region25
    $region24: #{text_rcnn_forward.1} parent=1 // pred_region
      %33 = dma.done [#allocation3], 1024
    $region25: #{text_rcnn_forward.1} parent=1 // pred_fallthru
      _
    %v34 = vld [vmem:[%s0] sm:$0xff]
    %v35 = vld [vmem:[%s0 + $0x8] sm:$0xff]
    %v36 = vld [vmem:[%s0 + $0x10] sm:$0xff]
    %v37 = vld [vmem:[%s0 + $0x18] sm:$0xff]
    %v38 = vld [vmem:[%s0 + $0x20] sm:$0xff]
    %v39 = vld [vmem:[%s0 + $0x28] sm:$0xff]
    %v40 = vld [vmem:[%s0 + $0x30] sm:$0xff]
    %v41 = vld [vmem:[%s0 + $0x38] sm:$0xff]
    %v42 = vld [vmem:[%s1] sm:$0xff]
    %v43 = vld [vmem:[%s1 + $0x8] sm:$0xff]
    %v44 = vld [vmem:[%s1 + $0x10] sm:$0xff]
    %v45 = vld [vmem:[%s1 + $0x18] sm:$0xff]
    %v46 = vld [vmem:[%s3] sm:$0x1]
    %v48 = vlaneseq
    %v49 = vshrl.u32 %v48, 7
    %v50 = vsub.s32 0, %v49
    %v51 = vrot.slane %v46, %v50
    %vm53 = vcmask 261120
    %v55 = vsel %vm53, %v34, 0
    %v58 = vsel %vm53, %v35, 0
    %v61 = vsel %vm53, %v36, 0
    %v64 = vsel %vm53, %v37, 0
    %v67 = vsel %vm53, %v38, 0
    %v70 = vsel %vm53, %v39, 0
    %v73 = vsel %vm53, %v40, 0
    %v76 = vsel %vm53, %v41, 0
    %78 = vmatprep.subr.mxu0 0.0
    %79 = vmatpush1.msra.mxu0 %v42
    %80 = vmatprep.subr.mxu0 0.0
    %81 = vmatpush1.msra.mxu0 %v43
    %82 = vmatprep.subr.mxu0 0.0
    %83 = vmatpush1.msra.mxu0 %v44
    %84 = vmatprep.subr.mxu0 0.0
    %85 = vmatpush1.msra.mxu0 %v45
    %86 = vmatprep.subr.mxu0 0.0
    %87 = vmatpush1.msra.mxu0 0.0
    %88 = vmatprep.subr.mxu0 0.0
    %89 = vmatpush1.msra.mxu0 0.0
    %90 = vmatprep.subr.mxu0 0.0
    %91 = vmatpush1.msra.mxu0 0.0
    %92 = vmatprep.subr.mxu0 0.0
    %93 = vmatpush1.msra.mxu0 0.0
    %94 = vmatprep.subr.mxu0 0.0
    %95 = vmatpush1.msra.mxu0 0.0
    %96 = vmatprep.subr.mxu0 0.0
    %97 = vmatpush1.msra.mxu0 0.0
    %98 = vmatprep.subr.mxu0 0.0
    %99 = vmatpush1.msra.mxu0 0.0
    %100 = vmatprep.subr.mxu0 0.0
    %101 = vmatpush1.msra.mxu0 0.0
    %102 = vmatprep.subr.mxu0 0.0
    %103 = vmatpush1.msra.mxu0 0.0
    %104 = vmatprep.subr.mxu0 0.0
    %105 = vmatpush1.msra.mxu0 0.0
    %106 = vmatprep.subr.mxu0 0.0
    %107 = vmatpush1.msra.mxu0 0.0
    %108 = vmatprep.subr.mxu0 0.0
    %109 = vmatpush1.msra.mxu0 0.0
    %110 = vmatprep.subr.mxu0 0.0
    %111 = vmatpush1.msra.mxu0 0.0
    %112 = vmatprep.subr.mxu0 0.0
    %113 = vmatpush1.msra.mxu0 0.0
    %114 = vmatprep.subr.mxu0 0.0
    %115 = vmatpush1.msra.mxu0 0.0
    %116 = vmatprep.subr.mxu0 0.0
    %117 = vmatpush1.msra.mxu0 0.0
    %118 = vmatprep.subr.mxu0 0.0
    %119 = vmatpush1.msra.mxu0 0.0
    %120 = vmatprep.subr.mxu0 0.0
    %121 = vmatpush1.msra.mxu0 0.0
    %122 = vmatprep.subr.mxu0 0.0
    %123 = vmatpush1.msra.mxu0 0.0
    %124 = vmatprep.subr.mxu0 0.0
    %125 = vmatpush1.msra.mxu0 0.0
    %126 = vmatprep.subr.mxu0 0.0
    %127 = vmatpush1.msra.mxu0 0.0
    %128 = vmatprep.subr.mxu0 0.0
    %129 = vmatpush1.msra.mxu0 0.0
    %130 = vmatprep.subr.mxu0 0.0
    %131 = vmatpush1.msra.mxu0 0.0
    %132 = vmatprep.subr.mxu0 0.0
    %133 = vmatpush1.msra.mxu0 0.0
    %134 = vmatprep.subr.mxu0 0.0
    %135 = vmatpush1.msra.mxu0 0.0
    %136 = vmatprep.subr.mxu0 0.0
    %137 = vmatpush1.msra.mxu0 0.0
    %138 = vmatprep.subr.mxu0 0.0
    %139 = vmatpush1.msra.mxu0 0.0
    %140 = vmatprep.subr.mxu0 0.0
    %141 = vmatpush1.msra.mxu0 0.0
    %142 = vmatprep.mubr.f32.mxu0 0.0
    %143 = vmatmul.mubr.f32.gmra.mrb[0].mxu0 %v55
    %v144 = vpop.f32.mrb[0].mxu0
    %v145 = vadd.f32 %v51, %v144
    %v146 = vpop.f32.mrb[0].mxu0
    %147 = vmatprep.mubr.f32.mxu0 0.0
    %148 = vmatmul.mubr.f32.gmra.mrb[0].mxu0 %v58
    %v149 = vpop.f32.mrb[0].mxu0
    %v150 = vadd.f32 %v51, %v149
    %v151 = vpop.f32.mrb[0].mxu0
    %152 = vmatprep.mubr.f32.mxu0 0.0
    %153 = vmatmul.mubr.f32.gmra.mrb[0].mxu0 %v61
    %v154 = vpop.f32.mrb[0].mxu0
    %v155 = vadd.f32 %v51, %v154
    %v156 = vpop.f32.mrb[0].mxu0
    %157 = vmatprep.mubr.f32.mxu0 0.0
    %158 = vmatmul.mubr.f32.gmra.mrb[0].mxu0 %v64
    %v159 = vpop.f32.mrb[0].mxu0
    %v160 = vadd.f32 %v51, %v159
    %v161 = vpop.f32.mrb[0].mxu0
    %162 = vmatprep.mubr.f32.mxu0 0.0
    %163 = vmatmul.mubr.f32.gmra.mrb[0].mxu0 %v67
    %v164 = vpop.f32.mrb[0].mxu0
    %v165 = vadd.f32 %v51, %v164
    %v166 = vpop.f32.mrb[0].mxu0
    %167 = vmatprep.mubr.f32.mxu0 0.0
    %168 = vmatmul.mubr.f32.gmra.mrb[0].mxu0 %v70
    %v169 = vpop.f32.mrb[0].mxu0
    %v170 = vadd.f32 %v51, %v169
    %v171 = vpop.f32.mrb[0].mxu0
    %172 = vmatprep.mubr.f32.mxu0 0.0
    %173 = vmatmul.mubr.f32.gmra.mrb[0].mxu0 %v73
    %v174 = vpop.f32.mrb[0].mxu0
    %v175 = vadd.f32 %v51, %v174
    %v176 = vpop.f32.mrb[0].mxu0
    %177 = vmatprep.mubr.f32.mxu0 0.0
    %178 = vmatmul.mubr.f32.gmra.mrb[0].mxu0 %v76
    %v179 = vpop.f32.mrb[0].mxu0
    %v180 = vadd.f32 %v51, %v179
    %v181 = vpop.f32.mrb[0].mxu0
    %182 = vdwg.mxu0
    %s183 = scalar_lea.vmem %s3, 1
    %v184 = vld [vmem:[%s183] sm:$0x1]
    %v185 = vld [vmem:[#allocation2] sm:$0xff]
    %v186 = vld [vmem:[#allocation2 + $0x8] sm:$0xff]
    %v187 = vld [vmem:[#allocation2 + $0x10] sm:$0xff]
    %v188 = vld [vmem:[#allocation2 + $0x18] sm:$0xff]
    %s189 = scalar_lea.vmem %s1, 32
    %v190 = vld [vmem:[%s189] sm:$0xff]
    %v191 = vld [vmem:[%s189 + $0x8] sm:$0xff]
    %v192 = vld [vmem:[%s189 + $0x10] sm:$0xff]
    %v193 = vld [vmem:[%s189 + $0x18] sm:$0xff]
    %s194 = scalar_lea.vmem [#allocation2], 32
    %v195 = vld [vmem:[%s194] sm:$0xff]
    %v196 = vld [vmem:[%s194 + $0x8] sm:$0xff]
    %v197 = vld [vmem:[%s194 + $0x10] sm:$0xff]
    %v198 = vld [vmem:[%s194 + $0x18] sm:$0xff]
    %v199 = vxor.u32 %v145, 2147483648
    %v200 = vmul.f32 %v199, 1.442695
    %v201 = vpow.pop %v200
    %v202 = vadd.f32 %v201, 1.0
    %v203 = vrcp.pop %v202
    %v204 = vmul.f32 1.0, %v203
    %v205 = vtanh.pop %v145
    %v206 = vmul.f32 %v204, 0.0
    %208 = vrot.lane.b32.xlu0 %v205, 64
    %v209 = vpop.permute.xlu0 %208
    %v211 = vmul.f32 %v204, %v209
    %213 = vrot.lane.b32.xlu0 %v211, 32
    %v214 = vpop.permute.xlu0 %213
    %v216 = vadd.f32 %v206, %v214
    %v217 = vtanh.pop %v216
    %219 = vrot.lane.b32.xlu0 %v217, 64
    %v220 = vpop.permute.xlu0 %219
    %v222 = vmul.f32 %v204, %v220
    %224 = vrot.lane.b32.xlu0 %v222, 32
    %v225 = vpop.permute.xlu0 %224
    %v227 = vsel %vm53, %v225, 0.0
    %vm228 = vcmask 523264
    %v230 = vsel %vm228, %v227, 0
    %232 = vmatprep.subr.mxu0 %v190
    %233 = vmatpush1.msra.mxu0 %v185
    %234 = vmatprep.subr.mxu0 %v191
    %235 = vmatpush1.msra.mxu0 %v186
    %236 = vmatprep.subr.mxu0 %v192
    %237 = vmatpush1.msra.mxu0 %v187
    %238 = vmatprep.subr.mxu0 %v193
    %239 = vmatpush1.msra.mxu0 %v188
    %240 = vmatprep.subr.mxu0 %v195
    %241 = vmatpush1.msra.mxu0 0.0
    %242 = vmatprep.subr.mxu0 %v196
    %243 = vmatpush1.msra.mxu0 0.0
    %244 = vmatprep.subr.mxu0 %v197
    %245 = vmatpush1.msra.mxu0 0.0
    %246 = vmatprep.subr.mxu0 %v198
    %247 = vmatpush1.msra.mxu0 0.0
    %248 = vmatprep.subr.mxu0 0.0
    %249 = vmatpush1.msra.mxu0 0.0
    %250 = vmatprep.subr.mxu0 0.0
    %251 = vmatpush1.msra.mxu0 0.0
    %252 = vmatprep.subr.mxu0 0.0
    %253 = vmatpush1.msra.mxu0 0.0
    %254 = vmatprep.subr.mxu0 0.0
    %255 = vmatpush1.msra.mxu0 0.0
    %256 = vmatprep.subr.mxu0 0.0
    %257 = vmatpush1.msra.mxu0 0.0
    %258 = vmatprep.subr.mxu0 0.0
    %259 = vmatpush1.msra.mxu0 0.0
    %260 = vmatprep.subr.mxu0 0.0
    %261 = vmatpush1.msra.mxu0 0.0
    %262 = vmatprep.subr.mxu0 0.0
    %263 = vmatpush1.msra.mxu0 0.0
    %264 = vmatprep.subr.mxu0 0.0
    %265 = vmatpush1.msra.mxu0 0.0
    %266 = vmatprep.subr.mxu0 0.0
    %267 = vmatpush1.msra.mxu0 0.0
    %268 = vmatprep.subr.mxu0 0.0
    %269 = vmatpush1.msra.mxu0 0.0
    %270 = vmatprep.subr.mxu0 0.0
    %271 = vmatpush1.msra.mxu0 0.0
    %272 = vmatprep.subr.mxu0 0.0
    %273 = vmatpush1.msra.mxu0 0.0
    %274 = vmatprep.subr.mxu0 0.0
    %275 = vmatpush1.msra.mxu0 0.0
    %276 = vmatprep.subr.mxu0 0.0
    %277 = vmatpush1.msra.mxu0 0.0
    %278 = vmatprep.subr.mxu0 0.0
    %279 = vmatpush1.msra.mxu0 0.0
    %280 = vmatprep.subr.mxu0 0.0
    %281 = vmatpush1.msra.mxu0 0.0
    %282 = vmatprep.subr.mxu0 0.0
    %283 = vmatpush1.msra.mxu0 0.0
    %284 = vmatprep.subr.mxu0 0.0
    %285 = vmatpush1.msra.mxu0 0.0
    %286 = vmatprep.subr.mxu0 0.0
    %287 = vmatpush1.msra.mxu0 0.0
    %288 = vmatprep.subr.mxu0 0.0
    %289 = vmatpush1.msra.mxu0 0.0
    %290 = vmatprep.subr.mxu0 0.0
    %291 = vmatpush1.msra.mxu0 0.0
    %292 = vmatprep.subr.mxu0 0.0
    %293 = vmatpush1.msra.mxu0 0.0
    %294 = vmatprep.subr.mxu0 0.0
    %295 = vmatpush1.msra.mxu0 0.0
    %296 = vmatprep.mubr.f32.mxu0 0.0
    %297 = vmatmul.mubr.f32.gmra.mrb[0].mxu0 %v230
    %v298 = vpop.f32.mrb[0].mxu0
    %v299 = vadd.f32 0.0, %v298
    %v300 = vpop.f32.mrb[0].mxu0
    %v301 = vadd.f32 0.0, %v300
    %302 = vdwg.mxu0
    %v304 = vlaneseq
    %v305 = vshrl.u32 %v304, 7
    %v306 = vsub.s32 0, %v305
    %v307 = vrot.slane %v184, %v306
    %v309 = vadd.f32 %v301, %v307
    %v310 = vxor.u32 %v309, 2147483648
    %v311 = vmul.f32 %v310, 1.442695
    %v312 = vpow.pop %v311
    %v313 = vadd.f32 %v312, 1.0
    %v314 = vrcp.pop %v313
    %v315 = vmul.f32 1.0, %v314
    %v316 = vtanh.pop %v309
    %v317 = vmul.f32 %v315, 0.0
    %319 = vrot.lane.b32.xlu0 %v316, 64
    %v320 = vpop.permute.xlu0 %319
    %v322 = vmul.f32 %v315, %v320
    %324 = vrot.lane.b32.xlu0 %v322, 32
    %v325 = vpop.permute.xlu0 %324
    %v327 = vadd.f32 %v317, %v325
    %v328 = vtanh.pop %v327
    %330 = vrot.lane.b32.xlu0 %v328, 64
    %v331 = vpop.permute.xlu0 %330
    %v333 = vmul.f32 %v315, %v331
    %v334 = vadd.f32 %v299, %v150
    %v335 = vxor.u32 %v334, 2147483648
    %v336 = vmul.f32 %v335, 1.442695
    %v337 = vpow.pop %v336
    %v338 = vadd.f32 %v337, 1.0
    %v339 = vrcp.pop %v338
    %v340 = vmul.f32 1.0, %v339
    %v341 = vtanh.pop %v334
    %v342 = vmul.f32 %v340, %v216
    %344 = vrot.lane.b32.xlu0 %v341, 64
    %v345 = vpop.permute.xlu0 %344
    %v347 = vmul.f32 %v340, %v345
    %349 = vrot.lane.b32.xlu0 %v347, 32
    %v350 = vpop.permute.xlu0 %349
    %v352 = vadd.f32 %v342, %v350
    %v353 = vtanh.pop %v352
    %355 = vrot.lane.b32.xlu0 %v353, 64
    %v356 = vpop.permute.xlu0 %355
    %v358 = vmul.f32 %v340, %v356
    %360 = vrot.lane.b32.xlu0 %v358, 32
    %v361 = vpop.permute.xlu0 %360
    %364 = vrot.lane.b32.xlu0 %v333, 64
    %v365 = vpop.permute.xlu0 %364
    %v367 = vsel %vm53, %v361, %v365
    %v369 = vsel %vm228, %v367, 0
    %371 = vmatprep.subr.mxu0 %v190
    %372 = vmatpush1.msra.mxu0 %v185
    %373 = vmatprep.subr.mxu0 %v191
    %374 = vmatpush1.msra.mxu0 %v186
    %375 = vmatprep.subr.mxu0 %v192
    %376 = vmatpush1.msra.mxu0 %v187
    %377 = vmatprep.subr.mxu0 %v193
    %378 = vmatpush1.msra.mxu0 %v188
    %379 = vmatprep.subr.mxu0 %v195
    %380 = vmatpush1.msra.mxu0 0.0
    %381 = vmatprep.subr.mxu0 %v196
    %382 = vmatpush1.msra.mxu0 0.0
    %383 = vmatprep.subr.mxu0 %v197
    %384 = vmatpush1.msra.mxu0 0.0
    %385 = vmatprep.subr.mxu0 %v198
    %386 = vmatpush1.msra.mxu0 0.0
    %387 = vmatprep.subr.mxu0 0.0
    %388 = vmatpush1.msra.mxu0 0.0
    %389 = vmatprep.subr.mxu0 0.0
    %390 = vmatpush1.msra.mxu0 0.0
    %391 = vmatprep.subr.mxu0 0.0
    %392 = vmatpush1.msra.mxu0 0.0
    %393 = vmatprep.subr.mxu0 0.0
    %394 = vmatpush1.msra.mxu0 0.0
    %395 = vmatprep.subr.mxu0 0.0
    %396 = vmatpush1.msra.mxu0 0.0
    %397 = vmatprep.subr.mxu0 0.0
    %398 = vmatpush1.msra.mxu0 0.0
    %399 = vmatprep.subr.mxu0 0.0
    %400 = vmatpush1.msra.mxu0 0.0
    %401 = vmatprep.subr.mxu0 0.0
    %402 = vmatpush1.msra.mxu0 0.0
    %403 = vmatprep.subr.mxu0 0.0
    %404 = vmatpush1.msra.mxu0 0.0
    %405 = vmatprep.subr.mxu0 0.0
    %406 = vmatpush1.msra.mxu0 0.0
    %407 = vmatprep.subr.mxu0 0.0
    %408 = vmatpush1.msra.mxu0 0.0
    %409 = vmatprep.subr.mxu0 0.0
    %410 = vmatpush1.msra.mxu0 0.0
    %411 = vmatprep.subr.mxu0 0.0
    %412 = vmatpush1.msra.mxu0 0.0
    %413 = vmatprep.subr.mxu0 0.0
    %414 = vmatpush1.msra.mxu0 0.0
    %415 = vmatprep.subr.mxu0 0.0
    %416 = vmatpush1.msra.mxu0 0.0
    %417 = vmatprep.subr.mxu0 0.0
    %418 = vmatpush1.msra.mxu0 0.0
    %419 = vmatprep.subr.mxu0 0.0
    %420 = vmatpush1.msra.mxu0 0.0
    %421 = vmatprep.subr.mxu0 0.0
    %422 = vmatpush1.msra.mxu0 0.0
    %423 = vmatprep.subr.mxu0 0.0
    %424 = vmatpush1.msra.mxu0 0.0
    %425 = vmatprep.subr.mxu0 0.0
    %426 = vmatpush1.msra.mxu0 0.0
    %427 = vmatprep.subr.mxu0 0.0
    %428 = vmatpush1.msra.mxu0 0.0
    %429 = vmatprep.subr.mxu0 0.0
    %430 = vmatpush1.msra.mxu0 0.0
    %431 = vmatprep.subr.mxu0 0.0
    %432 = vmatpush1.msra.mxu0 0.0
    %433 = vmatprep.subr.mxu0 0.0
    %434 = vmatpush1.msra.mxu0 0.0
    %435 = vmatprep.mubr.f32.mxu0 0.0
    %436 = vmatmul.mubr.f32.gmra.mrb[0].mxu0 %v369
    %v437 = vpop.f32.mrb[0].mxu0
    %v438 = vadd.f32 0.0, %v437
    %v439 = vpop.f32.mrb[0].mxu0
    %v440 = vadd.f32 0.0, %v439
    %441 = vdwg.mxu0
    %v442 = vadd.f32 %v440, %v307
    %v443 = vxor.u32 %v442, 2147483648
    %v444 = vmul.f32 %v443, 1.442695
    %v445 = vpow.pop %v444
    %v446 = vadd.f32 %v445, 1.0
    %v447 = vrcp.pop %v446
    %v448 = vmul.f32 1.0, %v447
    %v449 = vtanh.pop %v442
    %v450 = vmul.f32 %v448, %v327
    %452 = vrot.lane.b32.xlu0 %v449, 64
    %v453 = vpop.permute.xlu0 %452
    %v455 = vmul.f32 %v448, %v453
    %457 = vrot.lane.b32.xlu0 %v455, 32
    %v458 = vpop.permute.xlu0 %457
    %v460 = vadd.f32 %v450, %v458
    %v461 = vtanh.pop %v460
    %463 = vrot.lane.b32.xlu0 %v461, 64
    %v464 = vpop.permute.xlu0 %463
    %v466 = vmul.f32 %v448, %v464
    %v467 = vadd.f32 %v438, %v155
    %v468 = vxor.u32 %v467, 2147483648
    %v469 = vmul.f32 %v468, 1.442695
    %v470 = vpow.pop %v469
    %v471 = vadd.f32 %v470, 1.0
    %v472 = vrcp.pop %v471
    %v473 = vmul.f32 1.0, %v472
    %v474 = vtanh.pop %v467
    %v475 = vmul.f32 %v473, %v352
    %477 = vrot.lane.b32.xlu0 %v474, 64
    %v478 = vpop.permute.xlu0 %477
    %v480 = vmul.f32 %v473, %v478
    %482 = vrot.lane.b32.xlu0 %v480, 32
    %v483 = vpop.permute.xlu0 %482
    %v485 = vadd.f32 %v475, %v483
    %v486 = vtanh.pop %v485
    %488 = vrot.lane.b32.xlu0 %v486, 64
    %v489 = vpop.permute.xlu0 %488
    %v491 = vmul.f32 %v473, %v489
    %493 = vrot.lane.b32.xlu0 %v491, 32
    %v494 = vpop.permute.xlu0 %493
    %497 = vrot.lane.b32.xlu0 %v466, 64
    %v498 = vpop.permute.xlu0 %497
    %v500 = vsel %vm53, %v494, %v498
    %v502 = vsel %vm228, %v500, 0
    %504 = vmatprep.subr.mxu0 %v190
    %505 = vmatpush1.msra.mxu0 %v185
    %506 = vmatprep.subr.mxu0 %v191
    %507 = vmatpush1.msra.mxu0 %v186
    %508 = vmatprep.subr.mxu0 %v192
    %509 = vmatpush1.msra.mxu0 %v187
    %510 = vmatprep.subr.mxu0 %v193
    %511 = vmatpush1.msra.mxu0 %v188
    %512 = vmatprep.subr.mxu0 %v195
    %513 = vmatpush1.msra.mxu0 0.0
    %514 = vmatprep.subr.mxu0 %v196
    %515 = vmatpush1.msra.mxu0 0.0
    %516 = vmatprep.subr.mxu0 %v197
    %517 = vmatpush1.msra.mxu0 0.0
    %518 = vmatprep.subr.mxu0 %v198
    %519 = vmatpush1.msra.mxu0 0.0
    %520 = vmatprep.subr.mxu0 0.0
    %521 = vmatpush1.msra.mxu0 0.0
    %522 = vmatprep.subr.mxu0 0.0
    %523 = vmatpush1.msra.mxu0 0.0
    %524 = vmatprep.subr.mxu0 0.0
    %525 = vmatpush1.msra.mxu0 0.0
    %526 = vmatprep.subr.mxu0 0.0
    %527 = vmatpush1.msra.mxu0 0.0
    %528 = vmatprep.subr.mxu0 0.0
    %529 = vmatpush1.msra.mxu0 0.0
    %530 = vmatprep.subr.mxu0 0.0
    %531 = vmatpush1.msra.mxu0 0.0
    %532 = vmatprep.subr.mxu0 0.0
    %533 = vmatpush1.msra.mxu0 0.0
    %534 = vmatprep.subr.mxu0 0.0
    %535 = vmatpush1.msra.mxu0 0.0
    %536 = vmatprep.subr.mxu0 0.0
    %537 = vmatpush1.msra.mxu0 0.0
    %538 = vmatprep.subr.mxu0 0.0
    %539 = vmatpush1.msra.mxu0 0.0
    %540 = vmatprep.subr.mxu0 0.0
    %541 = vmatpush1.msra.mxu0 0.0
    %542 = vmatprep.subr.mxu0 0.0
    %543 = vmatpush1.msra.mxu0 0.0
    %544 = vmatprep.subr.mxu0 0.0
    %545 = vmatpush1.msra.mxu0 0.0
    %546 = vmatprep.subr.mxu0 0.0
    %547 = vmatpush1.msra.mxu0 0.0
    %548 = vmatprep.subr.mxu0 0.0
    %549 = vmatpush1.msra.mxu0 0.0
    %550 = vmatprep.subr.mxu0 0.0
    %551 = vmatpush1.msra.mxu0 0.0
    %552 = vmatprep.subr.mxu0 0.0
    %553 = vmatpush1.msra.mxu0 0.0
    %554 = vmatprep.subr.mxu0 0.0
    %555 = vmatpush1.msra.mxu0 0.0
    %556 = vmatprep.subr.mxu0 0.0
    %557 = vmatpush1.msra.mxu0 0.0
    %558 = vmatprep.subr.mxu0 0.0
    %559 = vmatpush1.msra.mxu0 0.0
    %560 = vmatprep.subr.mxu0 0.0
    %561 = vmatpush1.msra.mxu0 0.0
    %562 = vmatprep.subr.mxu0 0.0
    %563 = vmatpush1.msra.mxu0 0.0
    %564 = vmatprep.subr.mxu0 0.0
    %565 = vmatpush1.msra.mxu0 0.0
    %566 = vmatprep.subr.mxu0 0.0
    %567 = vmatpush1.msra.mxu0 0.0
    %568 = vmatprep.mubr.f32.mxu0 0.0
    %569 = vmatmul.mubr.f32.gmra.mrb[0].mxu0 %v502
    %v570 = vpop.f32.mrb[0].mxu0
    %v571 = vadd.f32 0.0, %v570
    %v572 = vpop.f32.mrb[0].mxu0
    %v573 = vadd.f32 0.0, %v572
    %574 = vdwg.mxu0
    %v575 = vadd.f32 %v573, %v307
    %v576 = vxor.u32 %v575, 2147483648
    %v577 = vmul.f32 %v576, 1.442695
    %v578 = vpow.pop %v577
    %v579 = vadd.f32 %v578, 1.0
    %v580 = vrcp.pop %v579
    %v581 = vmul.f32 1.0, %v580
    %v582 = vtanh.pop %v575
    %v583 = vmul.f32 %v581, %v460
    %585 = vrot.lane.b32.xlu0 %v582, 64
    %v586 = vpop.permute.xlu0 %585
    %v588 = vmul.f32 %v581, %v586
    %590 = vrot.lane.b32.xlu0 %v588, 32
    %v591 = vpop.permute.xlu0 %590
    %v593 = vadd.f32 %v583, %v591
    %v594 = vtanh.pop %v593
    %596 = vrot.lane.b32.xlu0 %v594, 64
    %v597 = vpop.permute.xlu0 %596
    %v599 = vmul.f32 %v581, %v597
    %v600 = vadd.f32 %v571, %v160
    %v601 = vxor.u32 %v600, 2147483648
    %v602 = vmul.f32 %v601, 1.442695
    %v603 = vpow.pop %v602
    %v604 = vadd.f32 %v603, 1.0
    %v605 = vrcp.pop %v604
    %v606 = vmul.f32 1.0, %v605
    %v607 = vtanh.pop %v600
    %v608 = vmul.f32 %v606, %v485
    %610 = vrot.lane.b32.xlu0 %v607, 64
    %v611 = vpop.permute.xlu0 %610
    %v613 = vmul.f32 %v606, %v611
    %615 = vrot.lane.b32.xlu0 %v613, 32
    %v616 = vpop.permute.xlu0 %615
    %v618 = vadd.f32 %v608, %v616
    %v619 = vtanh.pop %v618
    %621 = vrot.lane.b32.xlu0 %v619, 64
    %v622 = vpop.permute.xlu0 %621
    %v624 = vmul.f32 %v606, %v622
    %626 = vrot.lane.b32.xlu0 %v624, 32
    %v627 = vpop.permute.xlu0 %626
    %630 = vrot.lane.b32.xlu0 %v599, 64
    %v631 = vpop.permute.xlu0 %630
    %v633 = vsel %vm53, %v627, %v631
    %v635 = vsel %vm228, %v633, 0
    %637 = vmatprep.subr.mxu0 %v190
    %638 = vmatpush1.msra.mxu0 %v185
    %639 = vmatprep.subr.mxu0 %v191
    %640 = vmatpush1.msra.mxu0 %v186
    %641 = vmatprep.subr.mxu0 %v192
    %642 = vmatpush1.msra.mxu0 %v187
    %643 = vmatprep.subr.mxu0 %v193
    %644 = vmatpush1.msra.mxu0 %v188
    %645 = vmatprep.subr.mxu0 %v195
    %646 = vmatpush1.msra.mxu0 0.0
    %647 = vmatprep.subr.mxu0 %v196
    %648 = vmatpush1.msra.mxu0 0.0
    %649 = vmatprep.subr.mxu0 %v197
    %650 = vmatpush1.msra.mxu0 0.0
    %651 = vmatprep.subr.mxu0 %v198
    %652 = vmatpush1.msra.mxu0 0.0
    %653 = vmatprep.subr.mxu0 0.0
    %654 = vmatpush1.msra.mxu0 0.0
    %655 = vmatprep.subr.mxu0 0.0
    %656 = vmatpush1.msra.mxu0 0.0
    %657 = vmatprep.subr.mxu0 0.0
    %658 = vmatpush1.msra.mxu0 0.0
    %659 = vmatprep.subr.mxu0 0.0
    %660 = vmatpush1.msra.mxu0 0.0
    %661 = vmatprep.subr.mxu0 0.0
    %662 = vmatpush1.msra.mxu0 0.0
    %663 = vmatprep.subr.mxu0 0.0
    %664 = vmatpush1.msra.mxu0 0.0
    %665 = vmatprep.subr.mxu0 0.0
    %666 = vmatpush1.msra.mxu0 0.0
    %667 = vmatprep.subr.mxu0 0.0
    %668 = vmatpush1.msra.mxu0 0.0
    %669 = vmatprep.subr.mxu0 0.0
    %670 = vmatpush1.msra.mxu0 0.0
    %671 = vmatprep.subr.mxu0 0.0
    %672 = vmatpush1.msra.mxu0 0.0
    %673 = vmatprep.subr.mxu0 0.0
    %674 = vmatpush1.msra.mxu0 0.0
    %675 = vmatprep.subr.mxu0 0.0
    %676 = vmatpush1.msra.mxu0 0.0
    %677 = vmatprep.subr.mxu0 0.0
    %678 = vmatpush1.msra.mxu0 0.0
    %679 = vmatprep.subr.mxu0 0.0
    %680 = vmatpush1.msra.mxu0 0.0
    %681 = vmatprep.subr.mxu0 0.0
    %682 = vmatpush1.msra.mxu0 0.0
    %683 = vmatprep.subr.mxu0 0.0
    %684 = vmatpush1.msra.mxu0 0.0
    %685 = vmatprep.subr.mxu0 0.0
    %686 = vmatpush1.msra.mxu0 0.0
    %687 = vmatprep.subr.mxu0 0.0
    %688 = vmatpush1.msra.mxu0 0.0
    %689 = vmatprep.subr.mxu0 0.0
    %690 = vmatpush1.msra.mxu0 0.0
    %691 = vmatprep.subr.mxu0 0.0
    %692 = vmatpush1.msra.mxu0 0.0
    %693 = vmatprep.subr.mxu0 0.0
    %694 = vmatpush1.msra.mxu0 0.0
    %695 = vmatprep.subr.mxu0 0.0
    %696 = vmatpush1.msra.mxu0 0.0
    %697 = vmatprep.subr.mxu0 0.0
    %698 = vmatpush1.msra.mxu0 0.0
    %699 = vmatprep.subr.mxu0 0.0
    %700 = vmatpush1.msra.mxu0 0.0
    %701 = vmatprep.mubr.f32.mxu0 0.0
    %702 = vmatmul.mubr.f32.gmra.mrb[0].mxu0 %v635
    %v703 = vpop.f32.mrb[0].mxu0
    %v704 = vadd.f32 0.0, %v703
    %v705 = vpop.f32.mrb[0].mxu0
    %v706 = vadd.f32 0.0, %v705
    %707 = vdwg.mxu0
    %v708 = vadd.f32 %v706, %v307
    %v709 = vxor.u32 %v708, 2147483648
    %v710 = vmul.f32 %v709, 1.442695
    %v711 = vpow.pop %v710
    %v712 = vadd.f32 %v711, 1.0
    %v713 = vrcp.pop %v712
    %v714 = vmul.f32 1.0, %v713
    %v715 = vtanh.pop %v708
    %v716 = vmul.f32 %v714, %v593
    %718 = vrot.lane.b32.xlu0 %v715, 64
    %v719 = vpop.permute.xlu0 %718
    %v721 = vmul.f32 %v714, %v719
    %723 = vrot.lane.b32.xlu0 %v721, 32
    %v724 = vpop.permute.xlu0 %723
    %v726 = vadd.f32 %v716, %v724
    %v727 = vtanh.pop %v726
    %729 = vrot.lane.b32.xlu0 %v727, 64
    %v730 = vpop.permute.xlu0 %729
    %v732 = vmul.f32 %v714, %v730
    %v733 = vadd.f32 %v704, %v165
    %v734 = vxor.u32 %v733, 2147483648
    %v735 = vmul.f32 %v734, 1.442695
    %v736 = vpow.pop %v735
    %v737 = vadd.f32 %v736, 1.0
    %v738 = vrcp.pop %v737
    %v739 = vmul.f32 1.0, %v738
    %v740 = vtanh.pop %v733
    %v741 = vmul.f32 %v739, %v618
    %743 = vrot.lane.b32.xlu0 %v740, 64
    %v744 = vpop.permute.xlu0 %743
    %v746 = vmul.f32 %v739, %v744
    %748 = vrot.lane.b32.xlu0 %v746, 32
    %v749 = vpop.permute.xlu0 %748
    %v751 = vadd.f32 %v741, %v749
    %v752 = vtanh.pop %v751
    %754 = vrot.lane.b32.xlu0 %v752, 64
    %v755 = vpop.permute.xlu0 %754
    %v757 = vmul.f32 %v739, %v755
    %759 = vrot.lane.b32.xlu0 %v757, 32
    %v760 = vpop.permute.xlu0 %759
    %763 = vrot.lane.b32.xlu0 %v732, 64
    %v764 = vpop.permute.xlu0 %763
    %v766 = vsel %vm53, %v760, %v764
    %v768 = vsel %vm228, %v766, 0
    %770 = vmatprep.subr.mxu0 %v190
    %771 = vmatpush1.msra.mxu0 %v185
    %772 = vmatprep.subr.mxu0 %v191
    %773 = vmatpush1.msra.mxu0 %v186
    %774 = vmatprep.subr.mxu0 %v192
    %775 = vmatpush1.msra.mxu0 %v187
    %776 = vmatprep.subr.mxu0 %v193
    %777 = vmatpush1.msra.mxu0 %v188
    %778 = vmatprep.subr.mxu0 %v195
    %779 = vmatpush1.msra.mxu0 0.0
    %780 = vmatprep.subr.mxu0 %v196
    %781 = vmatpush1.msra.mxu0 0.0
    %782 = vmatprep.subr.mxu0 %v197
    %783 = vmatpush1.msra.mxu0 0.0
    %784 = vmatprep.subr.mxu0 %v198
    %785 = vmatpush1.msra.mxu0 0.0
    %786 = vmatprep.subr.mxu0 0.0
    %787 = vmatpush1.msra.mxu0 0.0
    %788 = vmatprep.subr.mxu0 0.0
    %789 = vmatpush1.msra.mxu0 0.0
    %790 = vmatprep.subr.mxu0 0.0
    %791 = vmatpush1.msra.mxu0 0.0
    %792 = vmatprep.subr.mxu0 0.0
    %793 = vmatpush1.msra.mxu0 0.0
    %794 = vmatprep.subr.mxu0 0.0
    %795 = vmatpush1.msra.mxu0 0.0
    %796 = vmatprep.subr.mxu0 0.0
    %797 = vmatpush1.msra.mxu0 0.0
    %798 = vmatprep.subr.mxu0 0.0
    %799 = vmatpush1.msra.mxu0 0.0
    %800 = vmatprep.subr.mxu0 0.0
    %801 = vmatpush1.msra.mxu0 0.0
    %802 = vmatprep.subr.mxu0 0.0
    %803 = vmatpush1.msra.mxu0 0.0
    %804 = vmatprep.subr.mxu0 0.0
    %805 = vmatpush1.msra.mxu0 0.0
    %806 = vmatprep.subr.mxu0 0.0
    %807 = vmatpush1.msra.mxu0 0.0
    %808 = vmatprep.subr.mxu0 0.0
    %809 = vmatpush1.msra.mxu0 0.0
    %810 = vmatprep.subr.mxu0 0.0
    %811 = vmatpush1.msra.mxu0 0.0
    %812 = vmatprep.subr.mxu0 0.0
    %813 = vmatpush1.msra.mxu0 0.0
    %814 = vmatprep.subr.mxu0 0.0
    %815 = vmatpush1.msra.mxu0 0.0
    %816 = vmatprep.subr.mxu0 0.0
    %817 = vmatpush1.msra.mxu0 0.0
    %818 = vmatprep.subr.mxu0 0.0
    %819 = vmatpush1.msra.mxu0 0.0
    %820 = vmatprep.subr.mxu0 0.0
    %821 = vmatpush1.msra.mxu0 0.0
    %822 = vmatprep.subr.mxu0 0.0
    %823 = vmatpush1.msra.mxu0 0.0
    %824 = vmatprep.subr.mxu0 0.0
    %825 = vmatpush1.msra.mxu0 0.0
    %826 = vmatprep.subr.mxu0 0.0
    %827 = vmatpush1.msra.mxu0 0.0
    %828 = vmatprep.subr.mxu0 0.0
    %829 = vmatpush1.msra.mxu0 0.0
    %830 = vmatprep.subr.mxu0 0.0
    %831 = vmatpush1.msra.mxu0 0.0
    %832 = vmatprep.subr.mxu0 0.0
    %833 = vmatpush1.msra.mxu0 0.0
    %834 = vmatprep.mubr.f32.mxu0 0.0
    %835 = vmatmul.mubr.f32.gmra.mrb[0].mxu0 %v768
    %v836 = vpop.f32.mrb[0].mxu0
    %v837 = vadd.f32 0.0, %v836
    %v838 = vpop.f32.mrb[0].mxu0
    %v839 = vadd.f32 0.0, %v838
    %840 = vdwg.mxu0
    %v841 = vadd.f32 %v839, %v307
    %v842 = vxor.u32 %v841, 2147483648
    %v843 = vmul.f32 %v842, 1.442695
    %v844 = vpow.pop %v843
    %v845 = vadd.f32 %v844, 1.0
    %v846 = vrcp.pop %v845
    %v847 = vmul.f32 1.0, %v846
    %v848 = vtanh.pop %v841
    %v849 = vmul.f32 %v847, %v726
    %851 = vrot.lane.b32.xlu0 %v848, 64
    %v852 = vpop.permute.xlu0 %851
    %v854 = vmul.f32 %v847, %v852
    %856 = vrot.lane.b32.xlu0 %v854, 32
    %v857 = vpop.permute.xlu0 %856
    %v859 = vadd.f32 %v849, %v857
    %v860 = vtanh.pop %v859
    %862 = vrot.lane.b32.xlu0 %v860, 64
    %v863 = vpop.permute.xlu0 %862
    %v865 = vmul.f32 %v847, %v863
    %v866 = vadd.f32 %v837, %v170
    %v867 = vxor.u32 %v866, 2147483648
    %v868 = vmul.f32 %v867, 1.442695
    %v869 = vpow.pop %v868
    %v870 = vadd.f32 %v869, 1.0
    %v871 = vrcp.pop %v870
    %v872 = vmul.f32 1.0, %v871
    %v873 = vtanh.pop %v866
    %v874 = vmul.f32 %v872, %v751
    %876 = vrot.lane.b32.xlu0 %v873, 64
    %v877 = vpop.permute.xlu0 %876
    %v879 = vmul.f32 %v872, %v877
    %881 = vrot.lane.b32.xlu0 %v879, 32
    %v882 = vpop.permute.xlu0 %881
    %v884 = vadd.f32 %v874, %v882
    %v885 = vtanh.pop %v884
    %887 = vrot.lane.b32.xlu0 %v885, 64
    %v888 = vpop.permute.xlu0 %887
    %v890 = vmul.f32 %v872, %v888
    %892 = vrot.lane.b32.xlu0 %v890, 32
    %v893 = vpop.permute.xlu0 %892
    %896 = vrot.lane.b32.xlu0 %v865, 64
    %v897 = vpop.permute.xlu0 %896
    %v899 = vsel %vm53, %v893, %v897
    %v901 = vsel %vm228, %v899, 0
    %903 = vmatprep.subr.mxu0 %v190
    %904 = vmatpush1.msra.mxu0 %v185
    %905 = vmatprep.subr.mxu0 %v191
    %906 = vmatpush1.msra.mxu0 %v186
    %907 = vmatprep.subr.mxu0 %v192
    %908 = vmatpush1.msra.mxu0 %v187
    %909 = vmatprep.subr.mxu0 %v193
    %910 = vmatpush1.msra.mxu0 %v188
    %911 = vmatprep.subr.mxu0 %v195
    %912 = vmatpush1.msra.mxu0 0.0
    %913 = vmatprep.subr.mxu0 %v196
    %914 = vmatpush1.msra.mxu0 0.0
    %915 = vmatprep.subr.mxu0 %v197
    %916 = vmatpush1.msra.mxu0 0.0
    %917 = vmatprep.subr.mxu0 %v198
    %918 = vmatpush1.msra.mxu0 0.0
    %919 = vmatprep.subr.mxu0 0.0
    %920 = vmatpush1.msra.mxu0 0.0
    %921 = vmatprep.subr.mxu0 0.0
    %922 = vmatpush1.msra.mxu0 0.0
    %923 = vmatprep.subr.mxu0 0.0
    %924 = vmatpush1.msra.mxu0 0.0
    %925 = vmatprep.subr.mxu0 0.0
    %926 = vmatpush1.msra.mxu0 0.0
    %927 = vmatprep.subr.mxu0 0.0
    %928 = vmatpush1.msra.mxu0 0.0
    %929 = vmatprep.subr.mxu0 0.0
    %930 = vmatpush1.msra.mxu0 0.0
    %931 = vmatprep.subr.mxu0 0.0
    %932 = vmatpush1.msra.mxu0 0.0
    %933 = vmatprep.subr.mxu0 0.0
    %934 = vmatpush1.msra.mxu0 0.0
    %935 = vmatprep.subr.mxu0 0.0
    %936 = vmatpush1.msra.mxu0 0.0
    %937 = vmatprep.subr.mxu0 0.0
    %938 = vmatpush1.msra.mxu0 0.0
    %939 = vmatprep.subr.mxu0 0.0
    %940 = vmatpush1.msra.mxu0 0.0
    %941 = vmatprep.subr.mxu0 0.0
    %942 = vmatpush1.msra.mxu0 0.0
    %943 = vmatprep.subr.mxu0 0.0
    %944 = vmatpush1.msra.mxu0 0.0
    %945 = vmatprep.subr.mxu0 0.0
    %946 = vmatpush1.msra.mxu0 0.0
    %947 = vmatprep.subr.mxu0 0.0
    %948 = vmatpush1.msra.mxu0 0.0
    %949 = vmatprep.subr.mxu0 0.0
    %950 = vmatpush1.msra.mxu0 0.0
    %951 = vmatprep.subr.mxu0 0.0
    %952 = vmatpush1.msra.mxu0 0.0
    %953 = vmatprep.subr.mxu0 0.0
    %954 = vmatpush1.msra.mxu0 0.0
    %955 = vmatprep.subr.mxu0 0.0
    %956 = vmatpush1.msra.mxu0 0.0
    %957 = vmatprep.subr.mxu0 0.0
    %958 = vmatpush1.msra.mxu0 0.0
    %959 = vmatprep.subr.mxu0 0.0
    %960 = vmatpush1.msra.mxu0 0.0
    %961 = vmatprep.subr.mxu0 0.0
    %962 = vmatpush1.msra.mxu0 0.0
    %963 = vmatprep.subr.mxu0 0.0
    %964 = vmatpush1.msra.mxu0 0.0
    %965 = vmatprep.subr.mxu0 0.0
    %966 = vmatpush1.msra.mxu0 0.0
    %967 = vmatprep.mubr.f32.mxu0 0.0
    %968 = vmatmul.mubr.f32.gmra.mrb[0].mxu0 %v901
    %v969 = vpop.f32.mrb[0].mxu0
    %v970 = vadd.f32 0.0, %v969
    %v971 = vpop.f32.mrb[0].mxu0
    %v972 = vadd.f32 0.0, %v971
    %973 = vdwg.mxu0
    %v974 = vadd.f32 %v972, %v307
    %v975 = vxor.u32 %v974, 2147483648
    %v976 = vmul.f32 %v975, 1.442695
    %v977 = vpow.pop %v976
    %v978 = vadd.f32 %v977, 1.0
    %v979 = vrcp.pop %v978
    %v980 = vmul.f32 1.0, %v979
    %v981 = vtanh.pop %v974
    %v982 = vmul.f32 %v980, %v859
    %984 = vrot.lane.b32.xlu0 %v981, 64
    %v985 = vpop.permute.xlu0 %984
    %v987 = vmul.f32 %v980, %v985
    %989 = vrot.lane.b32.xlu0 %v987, 32
    %v990 = vpop.permute.xlu0 %989
    %v992 = vadd.f32 %v982, %v990
    %v993 = vtanh.pop %v992
    %995 = vrot.lane.b32.xlu0 %v993, 64
    %v996 = vpop.permute.xlu0 %995
    %v998 = vmul.f32 %v980, %v996
    %v999 = vadd.f32 %v970, %v175
    %v1000 = vxor.u32 %v999, 2147483648
    %v1001 = vmul.f32 %v1000, 1.442695
    %v1002 = vpow.pop %v1001
    %v1003 = vadd.f32 %v1002, 1.0
    %v1004 = vrcp.pop %v1003
    %v1005 = vmul.f32 1.0, %v1004
    %v1006 = vtanh.pop %v999
    %v1007 = vmul.f32 %v1005, %v884
    %1009 = vrot.lane.b32.xlu0 %v1006, 64
    %v1010 = vpop.permute.xlu0 %1009
    %v1012 = vmul.f32 %v1005, %v1010
    %1014 = vrot.lane.b32.xlu0 %v1012, 32
    %v1015 = vpop.permute.xlu0 %1014
    %v1017 = vadd.f32 %v1007, %v1015
    %v1018 = vtanh.pop %v1017
    %1020 = vrot.lane.b32.xlu0 %v1018, 64
    %v1021 = vpop.permute.xlu0 %1020
    %v1023 = vmul.f32 %v1005, %v1021
    %1025 = vrot.lane.b32.xlu0 %v1023, 32
    %v1026 = vpop.permute.xlu0 %1025
    %1029 = vrot.lane.b32.xlu0 %v998, 64
    %v1030 = vpop.permute.xlu0 %1029
    %v1032 = vsel %vm53, %v1026, %v1030
    %v1034 = vsel %vm228, %v1032, 0
    %1036 = vmatprep.subr.mxu0 %v190
    %1037 = vmatpush1.msra.mxu0 %v185
    %1038 = vmatprep.subr.mxu0 %v191
    %1039 = vmatpush1.msra.mxu0 %v186
    %1040 = vmatprep.subr.mxu0 %v192
    %1041 = vmatpush1.msra.mxu0 %v187
    %1042 = vmatprep.subr.mxu0 %v193
    %1043 = vmatpush1.msra.mxu0 %v188
    %1044 = vmatprep.subr.mxu0 %v195
    %1045 = vmatpush1.msra.mxu0 0.0
    %1046 = vmatprep.subr.mxu0 %v196
    %1047 = vmatpush1.msra.mxu0 0.0
    %1048 = vmatprep.subr.mxu0 %v197
    %1049 = vmatpush1.msra.mxu0 0.0
    %1050 = vmatprep.subr.mxu0 %v198
    %1051 = vmatpush1.msra.mxu0 0.0
    %1052 = vmatprep.subr.mxu0 0.0
    %1053 = vmatpush1.msra.mxu0 0.0
    %1054 = vmatprep.subr.mxu0 0.0
    %1055 = vmatpush1.msra.mxu0 0.0
    %1056 = vmatprep.subr.mxu0 0.0
    %1057 = vmatpush1.msra.mxu0 0.0
    %1058 = vmatprep.subr.mxu0 0.0
    %1059 = vmatpush1.msra.mxu0 0.0
    %1060 = vmatprep.subr.mxu0 0.0
    %1061 = vmatpush1.msra.mxu0 0.0
    %1062 = vmatprep.subr.mxu0 0.0
    %1063 = vmatpush1.msra.mxu0 0.0
    %1064 = vmatprep.subr.mxu0 0.0
    %1065 = vmatpush1.msra.mxu0 0.0
    %1066 = vmatprep.subr.mxu0 0.0
    %1067 = vmatpush1.msra.mxu0 0.0
    %1068 = vmatprep.subr.mxu0 0.0
    %1069 = vmatpush1.msra.mxu0 0.0
    %1070 = vmatprep.subr.mxu0 0.0
    %1071 = vmatpush1.msra.mxu0 0.0
    %1072 = vmatprep.subr.mxu0 0.0
    %1073 = vmatpush1.msra.mxu0 0.0
    %1074 = vmatprep.subr.mxu0 0.0
    %1075 = vmatpush1.msra.mxu0 0.0
    %1076 = vmatprep.subr.mxu0 0.0
    %1077 = vmatpush1.msra.mxu0 0.0
    %1078 = vmatprep.subr.mxu0 0.0
    %1079 = vmatpush1.msra.mxu0 0.0
    %1080 = vmatprep.subr.mxu0 0.0
    %1081 = vmatpush1.msra.mxu0 0.0
    %1082 = vmatprep.subr.mxu0 0.0
    %1083 = vmatpush1.msra.mxu0 0.0
    %1084 = vmatprep.subr.mxu0 0.0
    %1085 = vmatpush1.msra.mxu0 0.0
    %1086 = vmatprep.subr.mxu0 0.0
    %1087 = vmatpush1.msra.mxu0 0.0
    %1088 = vmatprep.subr.mxu0 0.0
    %1089 = vmatpush1.msra.mxu0 0.0
    %1090 = vmatprep.subr.mxu0 0.0
    %1091 = vmatpush1.msra.mxu0 0.0
    %1092 = vmatprep.subr.mxu0 0.0
    %1093 = vmatpush1.msra.mxu0 0.0
    %1094 = vmatprep.subr.mxu0 0.0
    %1095 = vmatpush1.msra.mxu0 0.0
    %1096 = vmatprep.subr.mxu0 0.0
    %1097 = vmatpush1.msra.mxu0 0.0
    %1098 = vmatprep.subr.mxu0 0.0
    %1099 = vmatpush1.msra.mxu0 0.0
    %1100 = vmatprep.mubr.f32.mxu0 0.0
    %1101 = vmatmul.mubr.f32.gmra.mrb[0].mxu0 %v1034
    %v1102 = vpop.f32.mrb[0].mxu0
    %v1103 = vadd.f32 0.0, %v1102
    %v1104 = vpop.f32.mrb[0].mxu0
    %v1105 = vadd.f32 0.0, %v1104
    %1106 = vdwg.mxu0
    %v1107 = vadd.f32 %v1105, %v307
    %v1108 = vxor.u32 %v1107, 2147483648
    %v1109 = vmul.f32 %v1108, 1.442695
    %v1110 = vpow.pop %v1109
    %v1111 = vadd.f32 %v1110, 1.0
    %v1112 = vrcp.pop %v1111
    %v1113 = vmul.f32 1.0, %v1112
    %v1114 = vtanh.pop %v1107
    %v1115 = vmul.f32 %v1113, %v992
    %1117 = vrot.lane.b32.xlu0 %v1114, 64
    %v1118 = vpop.permute.xlu0 %1117
    %v1120 = vmul.f32 %v1113, %v1118
    %1122 = vrot.lane.b32.xlu0 %v1120, 32
    %v1123 = vpop.permute.xlu0 %1122
    %v1125 = vadd.f32 %v1115, %v1123
    %v1126 = vtanh.pop %v1125
    %1128 = vrot.lane.b32.xlu0 %v1126, 64
    %v1129 = vpop.permute.xlu0 %1128
    %v1131 = vmul.f32 %v1113, %v1129
    %v1132 = vadd.f32 %v1103, %v180
    %v1133 = vxor.u32 %v1132, 2147483648
    %v1134 = vmul.f32 %v1133, 1.442695
    %v1135 = vpow.pop %v1134
    %v1136 = vadd.f32 %v1135, 1.0
    %v1137 = vrcp.pop %v1136
    %v1138 = vmul.f32 1.0, %v1137
    %v1139 = vtanh.pop %v1132
    %v1140 = vmul.f32 %v1138, %v1017
    %1142 = vrot.lane.b32.xlu0 %v1139, 64
    %v1143 = vpop.permute.xlu0 %1142
    %v1145 = vmul.f32 %v1138, %v1143
    %1147 = vrot.lane.b32.xlu0 %v1145, 32
    %v1148 = vpop.permute.xlu0 %1147
    %v1150 = vadd.f32 %v1140, %v1148
    %v1151 = vtanh.pop %v1150
    %1153 = vrot.lane.b32.xlu0 %v1151, 64
    %v1154 = vpop.permute.xlu0 %1153
    %v1156 = vmul.f32 %v1138, %v1154
    %1158 = vrot.lane.b32.xlu0 %v1156, 32
    %v1159 = vpop.permute.xlu0 %1158
    %1162 = vrot.lane.b32.xlu0 %v1131, 64
    %v1163 = vpop.permute.xlu0 %1162
    %v1165 = vsel %vm53, %v1159, %v1163
    %v1167 = vsel %vm228, %v1165, 0
    %1169 = vmatprep.subr.mxu0 %v190
    %1170 = vmatpush1.msra.mxu0 %v185
    %1171 = vmatprep.subr.mxu0 %v191
    %1172 = vmatpush1.msra.mxu0 %v186
    %1173 = vmatprep.subr.mxu0 %v192
    %1174 = vmatpush1.msra.mxu0 %v187
    %1175 = vmatprep.subr.mxu0 %v193
    %1176 = vmatpush1.msra.mxu0 %v188
    %1177 = vmatprep.subr.mxu0 %v195
    %1178 = vmatpush1.msra.mxu0 0.0
    %1179 = vmatprep.subr.mxu0 %v196
    %1180 = vmatpush1.msra.mxu0 0.0
    %1181 = vmatprep.subr.mxu0 %v197
    %1182 = vmatpush1.msra.mxu0 0.0
    %1183 = vmatprep.subr.mxu0 %v198
    %1184 = vmatpush1.msra.mxu0 0.0
    %1185 = vmatprep.subr.mxu0 0.0
    %1186 = vmatpush1.msra.mxu0 0.0
    %1187 = vmatprep.subr.mxu0 0.0
    %1188 = vmatpush1.msra.mxu0 0.0
    %1189 = vmatprep.subr.mxu0 0.0
    %1190 = vmatpush1.msra.mxu0 0.0
    %1191 = vmatprep.subr.mxu0 0.0
    %1192 = vmatpush1.msra.mxu0 0.0
    %1193 = vmatprep.subr.mxu0 0.0
    %1194 = vmatpush1.msra.mxu0 0.0
    %1195 = vmatprep.subr.mxu0 0.0
    %1196 = vmatpush1.msra.mxu0 0.0
    %1197 = vmatprep.subr.mxu0 0.0
    %1198 = vmatpush1.msra.mxu0 0.0
    %1199 = vmatprep.subr.mxu0 0.0
    %1200 = vmatpush1.msra.mxu0 0.0
    %1201 = vmatprep.subr.mxu0 0.0
    %1202 = vmatpush1.msra.mxu0 0.0
    %1203 = vmatprep.subr.mxu0 0.0
    %1204 = vmatpush1.msra.mxu0 0.0
    %1205 = vmatprep.subr.mxu0 0.0
    %1206 = vmatpush1.msra.mxu0 0.0
    %1207 = vmatprep.subr.mxu0 0.0
    %1208 = vmatpush1.msra.mxu0 0.0
    %1209 = vmatprep.subr.mxu0 0.0
    %1210 = vmatpush1.msra.mxu0 0.0
    %1211 = vmatprep.subr.mxu0 0.0
    %1212 = vmatpush1.msra.mxu0 0.0
    %1213 = vmatprep.subr.mxu0 0.0
    %1214 = vmatpush1.msra.mxu0 0.0
    %1215 = vmatprep.subr.mxu0 0.0
    %1216 = vmatpush1.msra.mxu0 0.0
    %1217 = vmatprep.subr.mxu0 0.0
    %1218 = vmatpush1.msra.mxu0 0.0
    %1219 = vmatprep.subr.mxu0 0.0
    %1220 = vmatpush1.msra.mxu0 0.0
    %1221 = vmatprep.subr.mxu0 0.0
    %1222 = vmatpush1.msra.mxu0 0.0
    %1223 = vmatprep.subr.mxu0 0.0
    %1224 = vmatpush1.msra.mxu0 0.0
    %1225 = vmatprep.subr.mxu0 0.0
    %1226 = vmatpush1.msra.mxu0 0.0
    %1227 = vmatprep.subr.mxu0 0.0
    %1228 = vmatpush1.msra.mxu0 0.0
    %1229 = vmatprep.subr.mxu0 0.0
    %1230 = vmatpush1.msra.mxu0 0.0
    %1231 = vmatprep.subr.mxu0 0.0
    %1232 = vmatpush1.msra.mxu0 0.0
    %1233 = vmatprep.mubr.f32.mxu0 0.0
    %1234 = vmatmul.mubr.f32.gmra.mrb[0].mxu0 %v1167
    %v1235 = vpop.f32.mrb[0].mxu0
    %v1236 = vpop.f32.mrb[0].mxu0
    %v1237 = vadd.f32 0.0, %v1236
    %1238 = vdwg.mxu0
    %v1239 = vadd.f32 %v1237, %v307
    %v1240 = vxor.u32 %v1239, 2147483648
    %v1241 = vmul.f32 %v1240, 1.442695
    %v1242 = vpow.pop %v1241
    %v1243 = vadd.f32 %v1242, 1.0
    %v1244 = vrcp.pop %v1243
    %v1245 = vmul.f32 1.0, %v1244
    %v1246 = vtanh.pop %v1239
    %v1247 = vmul.f32 %v1245, %v1125
    %1249 = vrot.lane.b32.xlu0 %v1246, 64
    %v1250 = vpop.permute.xlu0 %1249
    %v1252 = vmul.f32 %v1245, %v1250
    %1254 = vrot.lane.b32.xlu0 %v1252, 32
    %v1255 = vpop.permute.xlu0 %1254
    %v1257 = vadd.f32 %v1247, %v1255
    %v1258 = vtanh.pop %v1257
    %1260 = vrot.lane.b32.xlu0 %v1258, 64
    %v1261 = vpop.permute.xlu0 %1260
    %v1263 = vmul.f32 %v1245, %v1261
    %1265 = vrot.lane.b32.xlu0 %v333, 32
    %v1266 = vpop.permute.xlu0 %1265
    %1267 = vrot.lane.b32.xlu0 %v466, 32
    %v1268 = vpop.permute.xlu0 %1267
    %1269 = vrot.lane.b32.xlu0 %v599, 32
    %v1270 = vpop.permute.xlu0 %1269
    %1271 = vrot.lane.b32.xlu0 %v732, 32
    %v1272 = vpop.permute.xlu0 %1271
    %1273 = vrot.lane.b32.xlu0 %v865, 32
    %v1274 = vpop.permute.xlu0 %1273
    %1275 = vrot.lane.b32.xlu0 %v998, 32
    %v1276 = vpop.permute.xlu0 %1275
    %1277 = vrot.lane.b32.xlu0 %v1131, 32
    %v1278 = vpop.permute.xlu0 %1277
    %1279 = vrot.lane.b32.xlu0 %v1263, 32
    %v1280 = vpop.permute.xlu0 %1279
    %1288 = vrot.lane.b32.xlu0 %v1266, 32
    %v1289 = vpop.permute.xlu0 %1288
    %1290 = vrot.lane.b32.xlu0 %v1268, 32
    %v1291 = vpop.permute.xlu0 %1290
    %1292 = vrot.lane.b32.xlu0 %v1270, 32
    %v1293 = vpop.permute.xlu0 %1292
    %1294 = vrot.lane.b32.xlu0 %v1272, 32
    %v1295 = vpop.permute.xlu0 %1294
    %1296 = vrot.lane.b32.xlu0 %v1274, 32
    %v1297 = vpop.permute.xlu0 %1296
    %1298 = vrot.lane.b32.xlu0 %v1276, 32
    %v1299 = vpop.permute.xlu0 %1298
    %1300 = vrot.lane.b32.xlu0 %v1278, 32
    %v1301 = vpop.permute.xlu0 %1300
    %1302 = vrot.lane.b32.xlu0 %v1280, 32
    %v1303 = vpop.permute.xlu0 %1302
    %1313 = vrot.lane.b32.xlu0 %v1268, 64
    %v1314 = vpop.permute.xlu0 %1313
    %1315 = vrot.lane.b32.xlu0 %v1270, 64
    %v1316 = vpop.permute.xlu0 %1315
    %1317 = vrot.lane.b32.xlu0 %v1272, 64
    %v1318 = vpop.permute.xlu0 %1317
    %1319 = vrot.lane.b32.xlu0 %v1274, 64
    %v1320 = vpop.permute.xlu0 %1319
    %1321 = vrot.lane.b32.xlu0 %v1276, 64
    %v1322 = vpop.permute.xlu0 %1321
    %1323 = vrot.lane.b32.xlu0 %v1278, 64
    %v1324 = vpop.permute.xlu0 %1323
    %1325 = vrot.lane.b32.xlu0 %v1280, 64
    %v1326 = vpop.permute.xlu0 %1325
    %1327 = vrot.lane.b32.xlu0 0.0, 64
    %v1328 = vpop.permute.xlu0 %1327
    %v1337 = vsel %vm53, 0.0, %v1289
    %v1338 = vsel %vm53, %v1266, %v1291
    %v1339 = vsel %vm53, %v1268, %v1293
    %v1340 = vsel %vm53, %v1270, %v1295
    %v1341 = vsel %vm53, %v1272, %v1297
    %v1342 = vsel %vm53, %v1274, %v1299
    %v1343 = vsel %vm53, %v1276, %v1301
    %v1344 = vsel %vm53, %v1278, %v1303
    %v1345 = vsel %vm228, %v1337, %v1314
    %v1346 = vsel %vm228, %v1338, %v1316
    %v1347 = vsel %vm228, %v1339, %v1318
    %v1348 = vsel %vm228, %v1340, %v1320
    %v1349 = vsel %vm228, %v1341, %v1322
    %v1350 = vsel %vm228, %v1342, %v1324
    %v1351 = vsel %vm228, %v1343, %v1326
    %v1352 = vsel %vm228, %v1344, %v1328
    %v1353 = vld [vmem:[%s4] sm:$0xff]
    %v1354 = vld [vmem:[%s4 + $0x8] sm:$0xff]
    %v1355 = vld [vmem:[%s4 + $0x10] sm:$0xff]
    %v1356 = vld [vmem:[%s4 + $0x18] sm:$0xff]
    %v1357 = vld [vmem:[%s4 + $0x20] sm:$0xff]
    %v1358 = vld [vmem:[%s4 + $0x28] sm:$0xff]
    %v1359 = vld [vmem:[%s4 + $0x30] sm:$0xff]
    %v1360 = vld [vmem:[%s4 + $0x38] sm:$0xff]
    %v1361 = vld [vmem:[%s4 + $0x40] sm:$0xff]
    %v1362 = vld [vmem:[%s4 + $0x48] sm:$0xff]
    %v1363 = vld [vmem:[%s4 + $0x50] sm:$0xff]
    %v1364 = vld [vmem:[%s4 + $0x58] sm:$0xff]
    %vm1365 = vcmask 785408
    %v1367 = vsel %vm1365, %v1345, 0
    %v1370 = vsel %vm1365, %v1346, 0
    %v1373 = vsel %vm1365, %v1347, 0
    %v1376 = vsel %vm1365, %v1348, 0
    %v1379 = vsel %vm1365, %v1349, 0
    %v1382 = vsel %vm1365, %v1350, 0
    %v1385 = vsel %vm1365, %v1351, 0
    %v1388 = vsel %vm1365, %v1352, 0
    %1390 = vmatprep.subr.mxu0 0.0
    %1391 = vmatpush1.msra.mxu0 %v1353
    %1392 = vmatprep.subr.mxu0 0.0
    %1393 = vmatpush1.msra.mxu0 %v1354
    %1394 = vmatprep.subr.mxu0 0.0
    %1395 = vmatpush1.msra.mxu0 %v1355
    %1396 = vmatprep.subr.mxu0 0.0
    %1397 = vmatpush1.msra.mxu0 %v1356
    %1398 = vmatprep.subr.mxu0 0.0
    %1399 = vmatpush1.msra.mxu0 %v1357
    %1400 = vmatprep.subr.mxu0 0.0
    %1401 = vmatpush1.msra.mxu0 %v1358
    %1402 = vmatprep.subr.mxu0 0.0
    %1403 = vmatpush1.msra.mxu0 %v1359
    %1404 = vmatprep.subr.mxu0 0.0
    %1405 = vmatpush1.msra.mxu0 %v1360
    %1406 = vmatprep.subr.mxu0 0.0
    %1407 = vmatpush1.msra.mxu0 %v1361
    %1408 = vmatprep.subr.mxu0 0.0
    %1409 = vmatpush1.msra.mxu0 %v1362
    %1410 = vmatprep.subr.mxu0 0.0
    %1411 = vmatpush1.msra.mxu0 %v1363
    %1412 = vmatprep.subr.mxu0 0.0
    %1413 = vmatpush1.msra.mxu0 %v1364
    %1414 = vmatprep.subr.mxu0 0.0
    %1415 = vmatpush1.msra.mxu0 0.0
    %1416 = vmatprep.subr.mxu0 0.0
    %1417 = vmatpush1.msra.mxu0 0.0
    %1418 = vmatprep.subr.mxu0 0.0
    %1419 = vmatpush1.msra.mxu0 0.0
    %1420 = vmatprep.subr.mxu0 0.0
    %1421 = vmatpush1.msra.mxu0 0.0
    %1422 = vmatprep.subr.mxu0 0.0
    %1423 = vmatpush1.msra.mxu0 0.0
    %1424 = vmatprep.subr.mxu0 0.0
    %1425 = vmatpush1.msra.mxu0 0.0
    %1426 = vmatprep.subr.mxu0 0.0
    %1427 = vmatpush1.msra.mxu0 0.0
    %1428 = vmatprep.subr.mxu0 0.0
    %1429 = vmatpush1.msra.mxu0 0.0
    %1430 = vmatprep.subr.mxu0 0.0
    %1431 = vmatpush1.msra.mxu0 0.0
    %1432 = vmatprep.subr.mxu0 0.0
    %1433 = vmatpush1.msra.mxu0 0.0
    %1434 = vmatprep.subr.mxu0 0.0
    %1435 = vmatpush1.msra.mxu0 0.0
    %1436 = vmatprep.subr.mxu0 0.0
    %1437 = vmatpush1.msra.mxu0 0.0
    %1438 = vmatprep.subr.mxu0 0.0
    %1439 = vmatpush1.msra.mxu0 0.0
    %1440 = vmatprep.subr.mxu0 0.0
    %1441 = vmatpush1.msra.mxu0 0.0
    %1442 = vmatprep.subr.mxu0 0.0
    %1443 = vmatpush1.msra.mxu0 0.0
    %1444 = vmatprep.subr.mxu0 0.0
    %1445 = vmatpush1.msra.mxu0 0.0
    %1446 = vmatprep.subr.mxu0 0.0
    %1447 = vmatpush1.msra.mxu0 0.0
    %1448 = vmatprep.subr.mxu0 0.0
    %1449 = vmatpush1.msra.mxu0 0.0
    %1450 = vmatprep.subr.mxu0 0.0
    %1451 = vmatpush1.msra.mxu0 0.0
    %1452 = vmatprep.subr.mxu0 0.0
    %1453 = vmatpush1.msra.mxu0 0.0
    %1454 = vmatprep.mubr.f32.mxu0 0.0
    %1455 = vmatmul.mubr.f32.gmra.mrb[0].mxu0 %v1367
    %v1456 = vpop.f32.mrb[0].mxu0
    %v1457 = vadd.f32 0.0, %v1456
    %v1458 = vpop.f32.mrb[0].mxu0
    %1459 = vmatprep.mubr.f32.mxu0 0.0
    %1460 = vmatmul.mubr.f32.gmra.mrb[0].mxu0 %v1370
    %v1461 = vpop.f32.mrb[0].mxu0
    %v1462 = vadd.f32 0.0, %v1461
    %v1463 = vpop.f32.mrb[0].mxu0
    %1464 = vmatprep.mubr.f32.mxu0 0.0
    %1465 = vmatmul.mubr.f32.gmra.mrb[0].mxu0 %v1373
    %v1466 = vpop.f32.mrb[0].mxu0
    %v1467 = vadd.f32 0.0, %v1466
    %v1468 = vpop.f32.mrb[0].mxu0
    %1469 = vmatprep.mubr.f32.mxu0 0.0
    %1470 = vmatmul.mubr.f32.gmra.mrb[0].mxu0 %v1376
    %v1471 = vpop.f32.mrb[0].mxu0
    %v1472 = vadd.f32 0.0, %v1471
    %v1473 = vpop.f32.mrb[0].mxu0
    %1474 = vmatprep.mubr.f32.mxu0 0.0
    %1475 = vmatmul.mubr.f32.gmra.mrb[0].mxu0 %v1379
    %v1476 = vpop.f32.mrb[0].mxu0
    %v1477 = vadd.f32 0.0, %v1476
    %v1478 = vpop.f32.mrb[0].mxu0
    %1479 = vmatprep.mubr.f32.mxu0 0.0
    %1480 = vmatmul.mubr.f32.gmra.mrb[0].mxu0 %v1382
    %v1481 = vpop.f32.mrb[0].mxu0
    %v1482 = vadd.f32 0.0, %v1481
    %v1483 = vpop.f32.mrb[0].mxu0
    %1484 = vmatprep.mubr.f32.mxu0 0.0
    %1485 = vmatmul.mubr.f32.gmra.mrb[0].mxu0 %v1385
    %v1486 = vpop.f32.mrb[0].mxu0
    %v1487 = vadd.f32 0.0, %v1486
    %v1488 = vpop.f32.mrb[0].mxu0
    %1489 = vmatprep.mubr.f32.mxu0 0.0
    %1490 = vmatmul.mubr.f32.gmra.mrb[0].mxu0 %v1388
    %v1491 = vpop.f32.mrb[0].mxu0
    %v1492 = vadd.f32 0.0, %v1491
    %v1493 = vpop.f32.mrb[0].mxu0
    %1494 = vdwg.mxu0
    %v1495 = vxor.u32 %v1457, 2147483648
    %v1496 = vxor.u32 %v1462, 2147483648
    %v1497 = vxor.u32 %v1467, 2147483648
    %v1498 = vxor.u32 %v1472, 2147483648
    %v1499 = vxor.u32 %v1477, 2147483648
    %v1500 = vxor.u32 %v1482, 2147483648
    %v1501 = vxor.u32 %v1487, 2147483648
    %v1502 = vxor.u32 %v1492, 2147483648
    %v1503 = vmul.f32 %v1495, 1.442695
    %v1504 = vpow.pop %v1503
    %v1505 = vmul.f32 %v1496, 1.442695
    %v1506 = vpow.pop %v1505
    %v1507 = vmul.f32 %v1497, 1.442695
    %v1508 = vpow.pop %v1507
    %v1509 = vmul.f32 %v1498, 1.442695
    %v1510 = vpow.pop %v1509
    %v1511 = vmul.f32 %v1499, 1.442695
    %v1512 = vpow.pop %v1511
    %v1513 = vmul.f32 %v1500, 1.442695
    %v1514 = vpow.pop %v1513
    %v1515 = vmul.f32 %v1501, 1.442695
    %v1516 = vpow.pop %v1515
    %v1517 = vmul.f32 %v1502, 1.442695
    %v1518 = vpow.pop %v1517
    %v1519 = vadd.f32 %v1504, 1.0
    %v1520 = vadd.f32 %v1506, 1.0
    %v1521 = vadd.f32 %v1508, 1.0
    %v1522 = vadd.f32 %v1510, 1.0
    %v1523 = vadd.f32 %v1512, 1.0
    %v1524 = vadd.f32 %v1514, 1.0
    %v1525 = vadd.f32 %v1516, 1.0
    %v1526 = vadd.f32 %v1518, 1.0
    %v1527 = vrcp.pop %v1519
    %v1528 = vmul.f32 1.0, %v1527
    %v1529 = vrcp.pop %v1520
    %v1530 = vmul.f32 1.0, %v1529
    %v1531 = vrcp.pop %v1521
    %v1532 = vmul.f32 1.0, %v1531
    %v1533 = vrcp.pop %v1522
    %v1534 = vmul.f32 1.0, %v1533
    %v1535 = vrcp.pop %v1523
    %v1536 = vmul.f32 1.0, %v1535
    %v1537 = vrcp.pop %v1524
    %v1538 = vmul.f32 1.0, %v1537
    %v1539 = vrcp.pop %v1525
    %v1540 = vmul.f32 1.0, %v1539
    %v1541 = vrcp.pop %v1526
    %v1542 = vmul.f32 1.0, %v1541
    %1551 = vrot.lane.b32.xlu0 %v1528, 32
    %v1552 = vpop.permute.xlu0 %1551
    %1553 = vrot.lane.b32.xlu0 %v1530, 32
    %v1554 = vpop.permute.xlu0 %1553
    %1555 = vrot.lane.b32.xlu0 %v1532, 32
    %v1556 = vpop.permute.xlu0 %1555
    %1557 = vrot.lane.b32.xlu0 %v1534, 32
    %v1558 = vpop.permute.xlu0 %1557
    %1559 = vrot.lane.b32.xlu0 %v1536, 32
    %v1560 = vpop.permute.xlu0 %1559
    %1561 = vrot.lane.b32.xlu0 %v1538, 32
    %v1562 = vpop.permute.xlu0 %1561
    %1563 = vrot.lane.b32.xlu0 %v1540, 32
    %v1564 = vpop.permute.xlu0 %1563
    %1565 = vrot.lane.b32.xlu0 %v1542, 32
    %v1566 = vpop.permute.xlu0 %1565
    %v1575 = vmul.f32 %v1457, %v1552
    %v1576 = vmul.f32 %v1462, %v1554
    %v1577 = vmul.f32 %v1467, %v1556
    %v1578 = vmul.f32 %v1472, %v1558
    %v1579 = vmul.f32 %v1477, %v1560
    %v1580 = vmul.f32 %v1482, %v1562
    %v1581 = vmul.f32 %v1487, %v1564
    %v1582 = vmul.f32 %v1492, %v1566
    %1591 = vrot.lane.b32.xlu0 %v1575, 96
    %v1592 = vpop.permute.xlu0 %1591
    %1593 = vrot.lane.b32.xlu0 %v1576, 96
    %v1594 = vpop.permute.xlu0 %1593
    %1595 = vrot.lane.b32.xlu0 %v1577, 96
    %v1596 = vpop.permute.xlu0 %1595
    %1597 = vrot.lane.b32.xlu0 %v1578, 96
    %v1598 = vpop.permute.xlu0 %1597
    %1599 = vrot.lane.b32.xlu0 %v1579, 96
    %v1600 = vpop.permute.xlu0 %1599
    %1601 = vrot.lane.b32.xlu0 %v1580, 96
    %v1602 = vpop.permute.xlu0 %1601
    %1603 = vrot.lane.b32.xlu0 %v1581, 96
    %v1604 = vpop.permute.xlu0 %1603
    %1605 = vrot.lane.b32.xlu0 %v1582, 96
    %v1606 = vpop.permute.xlu0 %1605
    %1615 = vst.msk [vmem:[%s5] sm:$0xff] %vm53, %v1592
    %1616 = vst.msk [vmem:[%s5 + $0x8] sm:$0xff] %vm53, %v1594
    %1617 = vst.msk [vmem:[%s5 + $0x10] sm:$0xff] %vm53, %v1596
    %1618 = vst.msk [vmem:[%s5 + $0x18] sm:$0xff] %vm53, %v1598
    %1619 = vst.msk [vmem:[%s5 + $0x20] sm:$0xff] %vm53, %v1600
    %1620 = vst.msk [vmem:[%s5 + $0x28] sm:$0xff] %vm53, %v1602
    %1621 = vst.msk [vmem:[%s5 + $0x30] sm:$0xff] %vm53, %v1604
    %1622 = vst.msk [vmem:[%s5 + $0x38] sm:$0xff] %vm53, %v1606
    // Predicated region
    $region26: #{text_rcnn_forward.1} parent=1 // pred_check
      _
    $region27: #{text_rcnn_forward.1} parent=1 // pred_check_branch
      %1624 = sbr.rel (0) target = $region29
    $region28: #{text_rcnn_forward.1} parent=1 // pred_region
      _
    $region29: #{text_rcnn_forward.1} parent=1 // pred_fallthru
      _
    // Predicated region
    $region30: #{text_rcnn_forward.1} parent=1 // pred_check
      _
    $region31: #{text_rcnn_forward.1} parent=1 // pred_check_branch
      %1626 = sbr.rel (0) target = $region33
    $region32: #{text_rcnn_forward.1} parent=1 // pred_region
      _
    $region33: #{text_rcnn_forward.1} parent=1 // pred_fallthru
      _
    %1627 = vsyncpa [#allocation3], 1

</llo_original>
